<compile_context>
chip_gen: v7x
topology: tpu7x:2x2x1
jax: 0.10.0
libtpu: 0.0.40
codegen_flags: <defaults>
</compile_context>

<pallas_src>
import functools

import jax
import jax.numpy as jnp
from jax.experimental import pallas as pl
from jax.experimental.pallas import tpu as pltpu

_BN_EPS = 1e-5
_LANE = 128


def _round_up(x, m):
    return (x + m - 1) // m * m


# ------------------------- hardware-aware small helpers -------------------------

@functools.lru_cache(maxsize=None)
def _vmem_limit_bytes():
    """Generation-aware scoped-VMEM limit: ~3/4 of physical (v5e/v6e ~96 MiB, v7x ~48 MiB),
    conservative 32 MiB fallback if the query is unavailable."""
    try:
        cap = int(pltpu.get_tpu_info().vmem_capacity_bytes)
        if cap > 0:
            return max(32 * 2**20, min(3 * cap // 4, 112 * 2**20))
    except Exception:
        pass
    return 32 * 2**20


def _compiler_params():
    return pltpu.CompilerParams(
        dimension_semantics=("parallel", "parallel"),
        vmem_limit_bytes=_vmem_limit_bytes())


def _pick_row_tile(ho, wpw, cp, n):
    """Rows per output tile: largest divisor of `ho` whose f32 working set stays within a
    per-tile budget (maximizes MXU M, minimizes per-grid-step overhead; whole-image tiles
    remove the old tr=1 cliff for awkward heights).  Prefers an even tile count when the
    batch is odd so the two v7x TensorCores stay balanced."""
    budget = 8 * 2**20                      # ~4 live f32 copies of the (tr+2, W, Cp) window
    divisors = sorted((d for d in range(1, ho + 1) if ho % d == 0), reverse=True)
    feasible = [d for d in divisors if 4 * (d + 2) * wpw * cp * 4 <= budget] or [1]
    if n % 2:
        even = [d for d in feasible if (ho // d) % 2 == 0]
        if even:
            return even[0]
    return feasible[0]


def _const_spec(shape):
    return pl.BlockSpec(shape, lambda i, r: (0,) * len(shape))


# ------------------------- column-shift (pltpu.roll) support --------------------

_ROLL_MODE = None   # "np" | "inv" | "concat"


def _probe_roll_mode():
    """Detect pltpu.roll's rotation convention (and availability for this layout) with a
    tiny one-shot kernel; fall back to a slice+concat shift otherwise."""
    global _ROLL_MODE
    if _ROLL_MODE is not None:
        return _ROLL_MODE
    try:
        def k(x_ref, o_ref):
            o_ref[...] = pltpu.roll(x_ref[...], 1, axis=1)

        x = jax.lax.broadcasted_iota(jnp.float32, (2, 16, 128), 1)
        out = pl.pallas_call(
            k, out_shape=jax.ShapeDtypeStruct((2, 16, 128), jnp.float32))(x)
        v = int(round(float(jax.device_get(out[0, 0, 0]))))
        if v == 15:
            _ROLL_MODE = "np"     # out[j] = in[(j - shift) % n]  (numpy convention)
        elif v == 1:
            _ROLL_MODE = "inv"    # out[j] = in[(j + shift) % n]
        else:
            _ROLL_MODE = "concat"
    except Exception:
        _ROLL_MODE = "concat"
    return _ROLL_MODE


def _shift_cols(a, dx):
    """out[:, j, :] = a[:, (j + dx) % W, :].  Used for the dx in {1,2} depthwise taps; the
    wrapped columns only ever land in the cropped-away tail of the fixed padded width."""
    if dx == 0:
        return a
    wpw = a.shape[1]
    if _ROLL_MODE == "np":
        return pltpu.roll(a, wpw - dx, axis=1)
    if _ROLL_MODE == "inv":
        return pltpu.roll(a, dx, axis=1)
    # Fallback: exact same semantics via (slower) slice + concat.
    return jnp.concatenate([a[:, dx:, :], a[:, :dx, :]], axis=1)


# --------------------------------- Pallas kernels --------------------------------

def _dw3x3_pw(a, wd_ref, wp_ref, tr):
    """Depthwise 3x3 valid conv on a fixed-width window (VPU, f32) + pointwise 1x1
    (MXU, bf16 operands, f32 accumulation).  `a` is (tr+2, W, Cp) f32, W multiple of 8."""
    # TODO(synk): on v6e/v7x the depthwise accumulation could run in packed bf16 (half the
    # VALU work); kept f32 so the same kernel stays correct and fast on v5e (no bf16 VPU).
    wd = wd_ref[...]                                      # (9, Cp) f32
    strips = (a, _shift_cols(a, 1), _shift_cols(a, 2))    # dx = 0,1,2 shifts, built once
    acc = strips[0][0:tr] * wd[0]                         # tap (dy=0,dx=0) seeds acc
    for k in range(1, 9):
        dy, dx = divmod(k, 3)
        acc = acc + strips[dx][dy:dy + tr] * wd[k]
    rows, wpw, cpad = acc.shape
    # W padded to 8 => this reshape is layout-preserving (no relayout copy).
    y = jnp.dot(acc.reshape(rows * wpw, cpad).astype(jnp.bfloat16), wp_ref[...],
                preferred_element_type=jnp.float32)
    return y.reshape(rows, wpw, cpad)                     # (tr, W, Cp) f32


def _sepconv_layer_kernel(tr, wo_valid, apply_relu, pre_norm, emit_stats, skip_stats,
                          *refs):
    """[deferred BN] -> [ReLU] -> depthwise 3x3 -> pointwise 1x1, emitting BN partial sums.

    The kernel emits per-tile channel sum / sum-of-squares for this layer's BN (and, on
    the first layer, for the skip-branch 1x1 conv) instead of normalizing in place, so the
    grid can tile over batch and output rows without changing batch-statistic semantics.
    Columns >= wo_valid of the fixed padded width are don't-care and masked out of stats.
    """
    it = iter(refs)
    x_ref = next(it)
    scale_ref = shift_ref = None
    if pre_norm:
        scale_ref, shift_ref = next(it), next(it)
    wd_ref, wp_ref = next(it), next(it)
    wskip_ref = next(it) if skip_stats else None
    y_ref = next(it)
    stats_ref = next(it) if (emit_stats or skip_stats) else None

    r = pl.program_id(1)
    _, _, wpw, cpad = x_ref.shape

    # (tr+2, W, Cp) halo'd row window: a pure outer-dim slice of the resident image block.
    a = x_ref[0, pl.ds(r * tr, tr + 2), :, :].astype(jnp.float32)
    if pre_norm:
        a = a * scale_ref[0] + shift_ref[0]        # previous layer's BatchNorm, deferred
    if apply_relu:
        a = jnp.maximum(a, 0.0)

    y = _dw3x3_pw(a, wd_ref, wp_ref, tr)           # (tr, W, Cp) f32
    y_ref[0] = y.astype(y_ref.dtype)               # bf16 HBM storage

    if emit_stats or skip_stats:
        stats_rows = []
        if emit_stats:
            col = jax.lax.broadcasted_iota(jnp.int32, (wpw, 1), 0)
            mask = (col < wo_valid).astype(jnp.float32)
            s1 = jnp.sum(y, axis=0)                # (W, Cp): cheap row reduce first,
            s2 = jnp.sum(y * y, axis=0)            # mask only the reduced slab
            stats_rows.append(jnp.sum(s1 * mask, axis=0, keepdims=True))
            stats_rows.append(jnp.sum(s2 * mask, axis=0, keepdims=True))
        if skip_stats:
            # Skip-branch 1x1-conv BN statistics over the RAW input rows owned by this
            # tile (padded columns are zero, so they contribute nothing to the sums).
            xa = x_ref[0, pl.ds(r * tr, tr), :, :]
            ya = jnp.dot(xa.reshape(tr * wpw, cpad), wskip_ref[...],
                         preferred_element_type=jnp.float32)
            stats_rows.append(jnp.sum(ya, axis=0, keepdims=True))
            stats_rows.append(jnp.sum(ya * ya, axis=0, keepdims=True))
        stats_ref[0, 0] = jnp.concatenate(stats_rows, axis=0)

        if skip_stats:
            # Only the last row tile also owns the two halo rows of the raw input; guard
            # the extra matmul with pl.when instead of an always-on masked compute.
            @pl.when(r == pl.num_programs(1) - 1)
            def _():
                xb = x_ref[0, pl.ds(r * tr + tr, 2), :, :]
                yb = jnp.dot(xb.reshape(2 * wpw, cpad), wskip_ref[...],
                             preferred_element_type=jnp.float32)
                sb = jnp.sum(yb, axis=0, keepdims=True)
                sb2 = jnp.sum(yb * yb, axis=0, keepdims=True)
                rows = ([jnp.zeros((2, cpad), jnp.float32)] if emit_stats else [])
                rows += [sb, sb2]
                stats_ref[0, 0] += jnp.concatenate(rows, axis=0)


def _final_layer_kernel(tr, apply_relu, pre_norm, skip_conv, *refs):
    """Last SepConv (no BN) fused with the residual: out = conv(h) + BN(skip_conv(x_crop)).

    The skip operand arrives as a per-row-tile, pre-shifted bf16 view of the raw input, so
    no skip tensor ever touches HBM, the residual add needs no standalone kernel, and the
    final layer does not keep a second full-image block resident (v7x VMEM)."""
    it = iter(refs)
    h_ref = next(it)
    scale_ref = shift_ref = None
    if pre_norm:
        scale_ref, shift_ref = next(it), next(it)
    wd_ref, wp_ref = next(it), next(it)
    xs_ref = next(it)
    if skip_conv:
        wskip_ref, sscale_ref, sshift_ref = next(it), next(it), next(it)
    o_ref = next(it)

    r = pl.program_id(1)
    a = h_ref[0, pl.ds(r * tr, tr + 2), :, :].astype(jnp.float32)
    if pre_norm:
        a = a * scale_ref[0] + shift_ref[0]
    if apply_relu:
        a = jnp.maximum(a, 0.0)

    y = _dw3x3_pw(a, wd_ref, wp_ref, tr)                  # (tr, W, Cp) f32

    xs = xs_ref[0]                                        # (tr, W, Cp) bf16, pre-aligned
    _, wpw, cpad = xs.shape
    if skip_conv:
        s = jnp.dot(xs.reshape(tr * wpw, cpad), wskip_ref[...],
                    preferred_element_type=jnp.float32).reshape(tr, wpw, cpad)
        s = s * sscale_ref[0] + sshift_ref[0]             # skip BN (deferred scale/shift)
    else:
        s = xs.astype(jnp.float32)

    o_ref[0] = y + s


# -------------------------------- pallas_call glue --------------------------------

def _run_sepconv_layer(x, pre, wd, wp_w, wskip, *, apply_relu, emit_stats, wo_valid):
    n, h_in, wpw, cp = x.shape
    ho = h_in - 2
    tr = _pick_row_tile(ho, wpw, cp, n)
    rt = ho // tr
    pre_norm = pre is not None
    skip_stats = wskip is not None
    n_stats = 2 * int(emit_stats) + 2 * int(skip_stats)

    arrays = [x]
    in_specs = [pl.BlockSpec((1, h_in, wpw, cp), lambda i, r: (i, 0, 0, 0))]
    if pre_norm:
        arrays += [pre[0], pre[1]]
        in_specs += [_const_spec((1, cp)), _const_spec((1, cp))]
    arrays += [wd, wp_w]
    in_specs += [_const_spec((9, cp)), _const_spec((cp, cp))]
    if skip_stats:
        arrays.append(wskip)
        in_specs.append(_const_spec((cp, cp)))

    out_shape = [jax.ShapeDtypeStruct((n, ho, wpw, cp), jnp.bfloat16)]
    out_specs = [pl.BlockSpec((1, tr, wpw, cp), lambda i, r: (i, r, 0, 0))]
    if n_stats:
        out_shape.append(jax.ShapeDtypeStruct((n, rt, n_stats, cp), jnp.float32))
        out_specs.append(pl.BlockSpec((1, 1, n_stats, cp), lambda i, r: (i, r, 0, 0)))

    kern = functools.partial(_sepconv_layer_kernel, tr, wo_valid, apply_relu, pre_norm,
                             emit_stats, skip_stats)
    if n_stats == 0:
        y = pl.pallas_call(kern, grid=(n, rt), in_specs=in_specs,
                           out_specs=out_specs[0], out_shape=out_shape[0],
                           compiler_params=_compiler_params())(*arrays)
        return y, None
    y, stats = pl.pallas_call(kern, grid=(n, rt), in_specs=in_specs,
                              out_specs=tuple(out_specs), out_shape=tuple(out_shape),
                              compiler_params=_compiler_params())(*arrays)
    return y, stats


def _run_final_layer(h_act, pre, wd, wp_w, x_skip, skip, *, apply_relu):
    n, h_in, wpw, cp = h_act.shape
    ho = h_in - 2
    tr = _pick_row_tile(ho, wpw, cp, n)
    rt = ho // tr
    pre_norm = pre is not None
    skip_conv = skip is not None

    arrays = [h_act]
    in_specs = [pl.BlockSpec((1, h_in, wpw, cp), lambda i, r: (i, 0, 0, 0))]
    if pre_norm:
        arrays += [pre[0], pre[1]]
        in_specs += [_const_spec((1, cp)), _const_spec((1, cp))]
    arrays += [wd, wp_w, x_skip]
    in_specs += [_const_spec((9, cp)), _const_spec((cp, cp)),
                 pl.BlockSpec((1, tr, wpw, cp), lambda i, r: (i, r, 0, 0))]
    if skip_conv:
        arrays += [skip[0], skip[1], skip[2]]
        in_specs += [_const_spec((cp, cp)), _const_spec((1, cp)), _const_spec((1, cp))]

    kern = functools.partial(_final_layer_kernel, tr, apply_relu, pre_norm, skip_conv)
    return pl.pallas_call(
        kern, grid=(n, rt), in_specs=in_specs,
        out_specs=pl.BlockSpec((1, tr, wpw, cp), lambda i, r: (i, r, 0, 0)),
        out_shape=jax.ShapeDtypeStruct((n, ho, wpw, cp), jnp.float32),
        compiler_params=_compiler_params(),
    )(*arrays)


# ----------------------------- Block config / params ------------------------------

def build_block_config(inplanes, planes, reps, stride=1, dilation=1,
                       start_with_relu=True, grow_first=True, is_last=True):
    # TODO(synk): stride != 1 path (stride-2 tail SepConv + strided skip conv) not wired
    # up; this covers the stride == 1 branch of the reference module.
    assert stride == 1
    del dilation  # reference hardcodes dilation=1 inside SeparableConv2d_same.depth_conv
    layers = []
    filters = planes
    if grow_first:
        layers.append({"relu": True, "cin": inplanes, "cout": planes, "bn": True})
        filters = planes
    for _ in range(reps - 1):
        layers.append({"relu": True, "cin": filters, "cout": filters, "bn": True})
    if not grow_first:
        layers.append({"relu": True, "cin": inplanes, "cout": planes, "bn": True})
    if not start_with_relu:
        layers[0]["relu"] = False
    if stride == 1 and is_last:
        layers.append({"relu": False, "cin": planes, "cout": planes, "bn": False})
    has_skip = (planes != inplanes) or (stride != 1)
    return layers, has_skip


def init_block_params(key, layers, has_skip, inplanes, planes):
    cp = _round_up(max(max(l["cin"], l["cout"]) for l in layers), _LANE)
    params = {"cp": cp, "layers": []}
    for cfg in layers:
        key, k1, k2 = jax.random.split(key, 3)
        wd = jnp.zeros((9, cp), jnp.float32).at[:, :cfg["cin"]].set(
            jax.random.normal(k1, (9, cfg["cin"]), jnp.float32) * 0.1)
        wp = jnp.zeros((cp, cp), jnp.float32).at[:cfg["cin"], :cfg["cout"]].set(
            jax.random.normal(k2, (cfg["cin"], cfg["cout"]), jnp.float32) * 0.1)
        params["layers"].append({
            "wd": wd,                               # depthwise taps (9, Cp), f32 (VPU)
            "wp": wp.astype(jnp.bfloat16),          # pointwise (Cp, Cp), bf16 (MXU)
            "gamma": jnp.ones((cp,), jnp.float32),
            "beta": jnp.zeros((cp,), jnp.float32),
        })
    if has_skip:
        key, k1 = jax.random.split(key)
        ws = jnp.zeros((cp, cp), jnp.float32).at[:inplanes, :planes].set(
            jax.random.normal(k1, (inplanes, planes), jnp.float32) * 0.1)
        params["skip_w"] = ws.astype(jnp.bfloat16)
        params["skip_gamma"] = jnp.ones((cp,), jnp.float32)
        params["skip_beta"] = jnp.zeros((cp,), jnp.float32)
    return params


def _bn_scale_shift(s, s2, count, gamma, beta):
    """Batch-stat BN folded into a per-channel (scale, shift) pair (tiny, runs in XLA)."""
    mean = s / count
    var = jnp.maximum(s2 / count - mean * mean, 0.0)   # biased variance (torch training)
    scale = gamma * jax.lax.rsqrt(var + _BN_EPS)
    shift = beta - mean * scale
    return scale.reshape(1, -1), shift.reshape(1, -1)


def block_forward(x_nchw, layers, has_skip, params):
    _probe_roll_mode()
    n, c_in, h, w = x_nchw.shape
    cp = params["cp"]
    L = len(layers)
    planes = layers[-1]["cout"]
    # TODO(synk): fused residual path requires the trailing no-BN SepConv (is_last=True,
    # stride=1) plus at least one preceding layer to host the skip-branch statistics.
    assert not layers[-1]["bn"] and L >= 2
    assert h > 2 * L and w > 2 * L

    wpw = _round_up(w, 8)        # sublane-aligned width, fixed across all layers
    # NCHW -> NHWC; pad channels to the lane width and W to the sublane width once, then
    # store in bf16 (halves HBM traffic; padded zeros stay exact).
    x = jnp.transpose(x_nchw, (0, 2, 3, 1)).astype(jnp.float32)
    x = jnp.pad(x, ((0, 0), (0, 0), (0, wpw - w), (0, cp - c_in)))
    x = x.astype(jnp.bfloat16)

    feat = x
    h_cur, w_valid = h, w
    pre = None          # deferred (scale, shift) of the previous layer's BN
    skip_pre = None     # deferred (scale, shift) of the skip-branch BN
    out = None
    for i, cfg in enumerate(layers):
        lp = params["layers"][i]
        ho, wo_valid = h_cur - 2, w_valid - 2
        if i == L - 1:
            # TODO(synk): the reference `x += skip` is ill-posed (padding=0 convs shrink
            # the main branch); the skip branch is center-cropped to the main-branch
            # extent, expressed as a pre-shifted per-row-tile view of the raw input.
            # TODO(synk): on v5e, reusing layer 0's skip matmul (emitting a bf16 side
            # tensor) instead of recomputing it here would halve this layer's MXU time.
            x_skip = jnp.roll(x, -L, axis=2)[:, L:L + ho, :, :]
            skip = (params["skip_w"], skip_pre[0], skip_pre[1]) if has_skip else None
            out = _run_final_layer(feat, pre, lp["wd"], lp["wp"], x_skip, skip,
                                   apply_relu=cfg["relu"])
        else:
            wskip = params["skip_w"] if (i == 0 and has_skip) else None
            y, stats = _run_sepconv_layer(feat, pre, lp["wd"], lp["wp"], wskip,
                                          apply_relu=cfg["relu"], emit_stats=cfg["bn"],
                                          wo_valid=wo_valid)
            pre = None
            if stats is not None:
                st = jnp.sum(stats, axis=(0, 1))          # (n_stats, Cp), tiny
                row = 0
                if cfg["bn"]:
                    pre = _bn_scale_shift(st[0], st[1], n * ho * wo_valid,
                                          lp["gamma"], lp["beta"])
                    row = 2
                if wskip is not None:
                    skip_pre = _bn_scale_shift(st[row], st[row + 1], n * h * w,
                                               params["skip_gamma"],
                                               params["skip_beta"])
            feat = y
        h_cur, w_valid = ho, wo_valid

    out = out[:, :, :w_valid, :planes]              # drop W + lane padding
    return jnp.transpose(out, (0, 3, 1, 2))         # NHWC -> NCHW


# --------------------------- pure-JAX reference (for checking) --------------------

def reference_forward(x_nchw, layers, has_skip, params):
    """Plain-JAX (f32 math) reference with the same semantics: valid 3x3 depthwise + 1x1
    pointwise, training-mode BN (biased batch stats), skip 1x1 conv + BN computed over the
    full input and center-cropped before the residual add.  The input is quantized to bf16
    like the kernel path; the kernels additionally use bf16 matmul operands / activation
    storage, so small deviations remain."""
    x = jnp.transpose(x_nchw, (0, 2, 3, 1)).astype(jnp.bfloat16).astype(jnp.float32)
    n = x.shape[0]
    L = len(layers)
    feat = x
    for i, cfg in enumerate(layers):
        lp = params["layers"][i]
        cin, cout = cfg["cin"], cfg["cout"]
        a = feat
        if cfg["relu"]:
            a = jnp.maximum(a, 0.0)
        wd = lp["wd"][:, :cin].astype(jnp.float32)
        wp = lp["wp"].astype(jnp.float32)[:cin, :cout]
        hh, ww = a.shape[1], a.shape[2]
        acc = jnp.zeros((n, hh - 2, ww - 2, cin), jnp.float32)
        for k in range(9):
            dy, dx = divmod(k, 3)
            acc = acc + a[:, dy:dy + hh - 2, dx:dx + ww - 2, :] * wd[k]
        y = jnp.einsum("nhwc,cd->nhwd", acc, wp)
        if cfg["bn"]:
            mean = jnp.mean(y, axis=(0, 1, 2))
            var = jnp.mean(jnp.square(y - mean), axis=(0, 1, 2))
            y = (y - mean) * jax.lax.rsqrt(var + _BN_EPS) * lp["gamma"][:cout] \
                + lp["beta"][:cout]
        feat = y
    if has_skip:
        inpl, planes = layers[0]["cin"], layers[-1]["cout"]
        ws = params["skip_w"].astype(jnp.float32)[:inpl, :planes]
        s = jnp.einsum("nhwc,cd->nhwd", x, ws)
        mean = jnp.mean(s, axis=(0, 1, 2))
        var = jnp.mean(jnp.square(s - mean), axis=(0, 1, 2))
        s = (s - mean) * jax.lax.rsqrt(var + _BN_EPS) * params["skip_gamma"][:planes] \
            + params["skip_beta"][:planes]
    else:
        s = x
    ho, wo = feat.shape[1], feat.shape[2]
    out = feat + s[:, L:L + ho, L:L + wo, :]
    return jnp.transpose(out, (0, 3, 1, 2))


# ----------------------------------------- main -----------------------------------

if __name__ == "__main__":
    inplanes, planes, reps = 8, 16, 2
    n, h, w = 2, 16, 12          # w=12 exercises the W->16 sublane padding path

    layers, has_skip = build_block_config(inplanes, planes, reps, stride=1, dilation=1,
                                          start_with_relu=True, grow_first=True,
                                          is_last=True)

    key = jax.random.PRNGKey(0)
    key, kx = jax.random.split(key)
    x = jax.random.normal(kx, (n, inplanes, h, w), jnp.float32)   # NCHW, like PyTorch
    params = init_block_params(key, layers, has_skip, inplanes, planes)

    out = jax.block_until_ready(block_forward(x, layers, has_skip, params))

    num_convs = len(layers)      # each valid 3x3 SepConv shrinks H, W by 2
    expected = (n, planes, h - 2 * num_convs, w - 2 * num_convs)
    assert out.shape == expected, (out.shape, expected)
    assert bool(jnp.all(jnp.isfinite(out)))

    # Check against the plain-JAX reference (loose tolerance: bf16 operands / storage).
    ref = reference_forward(x, layers, has_skip, params)
    err = float(jnp.max(jnp.abs(out - ref)))
    assert err < 0.2, f"kernel/reference mismatch: max|diff|={err:.4f}"
    print("KERNEL_OK")
</pallas_src>

<mosaic_0001>
module attributes {stable_mosaic.version = 11 : i64} {
  func.func @k(%arg0: memref<2x16x128xf32, #tpu.memory_space<vmem>>, %arg1: memref<2x16x128xf32, #tpu.memory_space<vmem>>) attributes {dimension_semantics = [], scalar_prefetch = 0 : i64, scratch_operands = 0 : i64, tpu.core_type = #tpu.core_type<tc>} {
    %c0 = arith.constant 0 : index
    %c0_0 = arith.constant 0 : index
    %c0_1 = arith.constant 0 : index
    %0 = vector.load %arg0[%c0, %c0_0, %c0_1] : memref<2x16x128xf32, #tpu.memory_space<vmem>>, vector<2x16x128xf32>
    %c1_i32 = arith.constant 1 : i32
    %1 = tpu.dynamic_rotate %0 by %c1_i32 dim 1 : vector<2x16x128xf32>, i32 -> vector<2x16x128xf32>
    %c0_2 = arith.constant 0 : index
    %c0_3 = arith.constant 0 : index
    %c0_4 = arith.constant 0 : index
    %2 = vector.load %arg1[%c0_2, %c0_3, %c0_4] : memref<2x16x128xf32, #tpu.memory_space<vmem>>, vector<2x16x128xf32>
    tpu.vector_store %arg1[%c0_2, %c0_3, %c0_4], %1 {strides = array<i32>} : memref<2x16x128xf32, #tpu.memory_space<vmem>>, vector<2x16x128xf32>,
    return
  }
}

module attributes {stable_mosaic.version = 11 : i64} {
  func.func @_sepconv_layer_kernel(%arg0: i32, %arg1: i32, %arg2: memref<1x16x16x128xbf16, #tpu.memory_space<vmem>>, %arg3: memref<9x128xf32, #tpu.memory_space<vmem>>, %arg4: memref<128x128xbf16, #tpu.memory_space<vmem>>, %arg5: memref<128x128xbf16, #tpu.memory_space<vmem>>, %arg6: memref<1x14x16x128xbf16, #tpu.memory_space<vmem>>, %arg7: memref<1x1x4x128xf32, #tpu.memory_space<vmem>>) attributes {dimension_semantics = [#tpu.dimension_semantics<parallel>, #tpu.dimension_semantics<parallel>], iteration_bounds = array<i64: 2, 1>, scalar_prefetch = 0 : i64, scratch_operands = 0 : i64, tpu.core_type = #tpu.core_type<tc>, window_params = [{transform_indices = @transform_0, window_bounds = array<i64: 1, 16, 16, 128>}, {pipeline_mode = #tpu.pipeline_mode<synchronous>, transform_indices = @transform_1, window_bounds = array<i64: 9, 128>}, {pipeline_mode = #tpu.pipeline_mode<synchronous>, transform_indices = @transform_2, window_bounds = array<i64: 128, 128>}, {pipeline_mode = #tpu.pipeline_mode<synchronous>, transform_indices = @transform_3, window_bounds = array<i64: 128, 128>}, {transform_indices = @transform_4, window_bounds = array<i64: 1, 14, 16, 128>}, {transform_indices = @transform_5, window_bounds = array<i64: 1, 1, 4, 128>}]} {
    %c14_i32 = arith.constant 14 : i32
    %0 = arith.muli %arg1, %c14_i32 : i32
    %c0 = arith.constant 0 : index
    %1 = arith.index_cast %0 : i32 to index
    %c0_0 = arith.constant 0 : index
    %c0_1 = arith.constant 0 : index
    %2 = vector.load %arg2[%c0, %1, %c0_0, %c0_1] : memref<1x16x16x128xbf16, #tpu.memory_space<vmem>>, vector<1x16x16x128xbf16>
    %3 = vector.shape_cast %2 : vector<1x16x16x128xbf16> to vector<16x16x128xbf16>
    %4 = arith.extf %3 : vector<16x16x128xbf16> to vector<16x16x128xf32>
    %cst = arith.constant 0.000000e+00 : f32
    %5 = vector.broadcast %cst : f32 to vector<16x16x128xf32>
    %6 = arith.maximumf %4, %5 : vector<16x16x128xf32>
    %c0_2 = arith.constant 0 : index
    %c0_3 = arith.constant 0 : index
    %7 = vector.load %arg3[%c0_2, %c0_3] : memref<9x128xf32, #tpu.memory_space<vmem>>, vector<9x128xf32>
    %8 = vector.extract_strided_slice %6 {offsets = [0, 1, 0], sizes = [16, 15, 128], strides = [1, 1, 1]} : vector<16x16x128xf32> to vector<16x15x128xf32>
    %9 = vector.extract_strided_slice %6 {offsets = [0, 0, 0], sizes = [16, 1, 128], strides = [1, 1, 1]} : vector<16x16x128xf32> to vector<16x1x128xf32>
    %10 = tpu.concatenate %8, %9 in 1 : vector<16x15x128xf32>, vector<16x1x128xf32> -> vector<16x16x128xf32>
    %11 = vector.extract_strided_slice %6 {offsets = [0, 2, 0], sizes = [16, 14, 128], strides = [1, 1, 1]} : vector<16x16x128xf32> to vector<16x14x128xf32>
    %12 = vector.extract_strided_slice %6 {offsets = [0, 0, 0], sizes = [16, 2, 128], strides = [1, 1, 1]} : vector<16x16x128xf32> to vector<16x2x128xf32>
    %13 = tpu.concatenate %11, %12 in 1 : vector<16x14x128xf32>, vector<16x2x128xf32> -> vector<16x16x128xf32>
    %14 = vector.extract_strided_slice %6 {offsets = [0, 0, 0], sizes = [14, 16, 128], strides = [1, 1, 1]} : vector<16x16x128xf32> to vector<14x16x128xf32>
    %15 = vector.extract_strided_slice %7 {offsets = [0, 0], sizes = [1, 128], strides = [1, 1]} : vector<9x128xf32> to vector<1x128xf32>
    %16 = vector.shape_cast %15 : vector<1x128xf32> to vector<128xf32>
    %17 = vector.shape_cast %16 : vector<128xf32> to vector<1x1x128xf32>
    %18 = vector.broadcast %17 : vector<1x1x128xf32> to vector<14x16x128xf32>
    %19 = arith.mulf %14, %18 : vector<14x16x128xf32>
    %20 = vector.extract_strided_slice %10 {offsets = [0, 0, 0], sizes = [14, 16, 128], strides = [1, 1, 1]} : vector<16x16x128xf32> to vector<14x16x128xf32>
    %21 = vector.extract_strided_slice %7 {offsets = [1, 0], sizes = [1, 128], strides = [1, 1]} : vector<9x128xf32> to vector<1x128xf32>
    %22 = vector.shape_cast %21 : vector<1x128xf32> to vector<128xf32>
    %23 = vector.shape_cast %22 : vector<128xf32> to vector<1x1x128xf32>
    %24 = vector.broadcast %23 : vector<1x1x128xf32> to vector<14x16x128xf32>
    %25 = arith.mulf %20, %24 : vector<14x16x128xf32>
    %26 = arith.addf %19, %25 : vector<14x16x128xf32>
    %27 = vector.extract_strided_slice %13 {offsets = [0, 0, 0], sizes = [14, 16, 128], strides = [1, 1, 1]} : vector<16x16x128xf32> to vector<14x16x128xf32>
    %28 = vector.extract_strided_slice %7 {offsets = [2, 0], sizes = [1, 128], strides = [1, 1]} : vector<9x128xf32> to vector<1x128xf32>
    %29 = vector.shape_cast %28 : vector<1x128xf32> to vector<128xf32>
    %30 = vector.shape_cast %29 : vector<128xf32> to vector<1x1x128xf32>
    %31 = vector.broadcast %30 : vector<1x1x128xf32> to vector<14x16x128xf32>
    %32 = arith.mulf %27, %31 : vector<14x16x128xf32>
    %33 = arith.addf %26, %32 : vector<14x16x128xf32>
    %34 = vector.extract_strided_slice %6 {offsets = [1, 0, 0], sizes = [14, 16, 128], strides = [1, 1, 1]} : vector<16x16x128xf32> to vector<14x16x128xf32>
    %35 = vector.extract_strided_slice %7 {offsets = [3, 0], sizes = [1, 128], strides = [1, 1]} : vector<9x128xf32> to vector<1x128xf32>
    %36 = vector.shape_cast %35 : vector<1x128xf32> to vector<128xf32>
    %37 = vector.shape_cast %36 : vector<128xf32> to vector<1x1x128xf32>
    %38 = vector.broadcast %37 : vector<1x1x128xf32> to vector<14x16x128xf32>
    %39 = arith.mulf %34, %38 : vector<14x16x128xf32>
    %40 = arith.addf %33, %39 : vector<14x16x128xf32>
    %41 = vector.extract_strided_slice %10 {offsets = [1, 0, 0], sizes = [14, 16, 128], strides = [1, 1, 1]} : vector<16x16x128xf32> to vector<14x16x128xf32>
    %42 = vector.extract_strided_slice %7 {offsets = [4, 0], sizes = [1, 128], strides = [1, 1]} : vector<9x128xf32> to vector<1x128xf32>
    %43 = vector.shape_cast %42 : vector<1x128xf32> to vector<128xf32>
    %44 = vector.shape_cast %43 : vector<128xf32> to vector<1x1x128xf32>
    %45 = vector.broadcast %44 : vector<1x1x128xf32> to vector<14x16x128xf32>
    %46 = arith.mulf %41, %45 : vector<14x16x128xf32>
    %47 = arith.addf %40, %46 : vector<14x16x128xf32>
    %48 = vector.extract_strided_slice %13 {offsets = [1, 0, 0], sizes = [14, 16, 128], strides = [1, 1, 1]} : vector<16x16x128xf32> to vector<14x16x128xf32>
    %49 = vector.extract_strided_slice %7 {offsets = [5, 0], sizes = [1, 128], strides = [1, 1]} : vector<9x128xf32> to vector<1x128xf32>
    %50 = vector.shape_cast %49 : vector<1x128xf32> to vector<128xf32>
    %51 = vector.shape_cast %50 : vector<128xf32> to vector<1x1x128xf32>
    %52 = vector.broadcast %51 : vector<1x1x128xf32> to vector<14x16x128xf32>
    %53 = arith.mulf %48, %52 : vector<14x16x128xf32>
    %54 = arith.addf %47, %53 : vector<14x16x128xf32>
    %55 = vector.extract_strided_slice %6 {offsets = [2, 0, 0], sizes = [14, 16, 128], strides = [1, 1, 1]} : vector<16x16x128xf32> to vector<14x16x128xf32>
    %56 = vector.extract_strided_slice %7 {offsets = [6, 0], sizes = [1, 128], strides = [1, 1]} : vector<9x128xf32> to vector<1x128xf32>
    %57 = vector.shape_cast %56 : vector<1x128xf32> to vector<128xf32>
    %58 = vector.shape_cast %57 : vector<128xf32> to vector<1x1x128xf32>
    %59 = vector.broadcast %58 : vector<1x1x128xf32> to vector<14x16x128xf32>
    %60 = arith.mulf %55, %59 : vector<14x16x128xf32>
    %61 = arith.addf %54, %60 : vector<14x16x128xf32>
    %62 = vector.extract_strided_slice %10 {offsets = [2, 0, 0], sizes = [14, 16, 128], strides = [1, 1, 1]} : vector<16x16x128xf32> to vector<14x16x128xf32>
    %63 = vector.extract_strided_slice %7 {offsets = [7, 0], sizes = [1, 128], strides = [1, 1]} : vector<9x128xf32> to vector<1x128xf32>
    %64 = vector.shape_cast %63 : vector<1x128xf32> to vector<128xf32>
    %65 = vector.shape_cast %64 : vector<128xf32> to vector<1x1x128xf32>
    %66 = vector.broadcast %65 : vector<1x1x128xf32> to vector<14x16x128xf32>
    %67 = arith.mulf %62, %66 : vector<14x16x128xf32>
    %68 = arith.addf %61, %67 : vector<14x16x128xf32>
    %69 = vector.extract_strided_slice %13 {offsets = [2, 0, 0], sizes = [14, 16, 128], strides = [1, 1, 1]} : vector<16x16x128xf32> to vector<14x16x128xf32>
    %70 = vector.extract_strided_slice %7 {offsets = [8, 0], sizes = [1, 128], strides = [1, 1]} : vector<9x128xf32> to vector<1x128xf32>
    %71 = vector.shape_cast %70 : vector<1x128xf32> to vector<128xf32>
    %72 = vector.shape_cast %71 : vector<128xf32> to vector<1x1x128xf32>
    %73 = vector.broadcast %72 : vector<1x1x128xf32> to vector<14x16x128xf32>
    %74 = arith.mulf %69, %73 : vector<14x16x128xf32>
    %75 = arith.addf %68, %74 : vector<14x16x128xf32>
    %76 = vector.shape_cast %75 : vector<14x16x128xf32> to vector<224x128xf32>
    %77 = arith.truncf %76 : vector<224x128xf32> to vector<224x128xbf16>
    %c0_4 = arith.constant 0 : index
    %c0_5 = arith.constant 0 : index
    %78 = vector.load %arg4[%c0_4, %c0_5] : memref<128x128xbf16, #tpu.memory_space<vmem>>, vector<128x128xbf16>
    %cst_6 = arith.constant dense<0.000000e+00> : vector<224x128xf32>
    %79 = tpu.matmul %77, %78, %cst_6 {dimension_numbers = #tpu.dot_dimension_numbers<[1], [0], [0], [1], [0, 0, 1, 1], [], []>} : vector<224x128xbf16>, vector<128x128xbf16>, vector<224x128xf32> -> vector<224x128xf32>
    %80 = vector.shape_cast %79 : vector<224x128xf32> to vector<14x16x128xf32>
    %81 = arith.truncf %80 : vector<14x16x128xf32> to vector<14x16x128xbf16>
    %c0_7 = arith.constant 0 : index
    %c0_8 = arith.constant 0 : index
    %c0_9 = arith.constant 0 : index
    %c0_10 = arith.constant 0 : index
    %82 = vector.load %arg6[%c0_7, %c0_8, %c0_9, %c0_10] : memref<1x14x16x128xbf16, #tpu.memory_space<vmem>>, vector<1x14x16x128xbf16>
    %83 = vector.shape_cast %82 : vector<1x14x16x128xbf16> to vector<14x16x128xbf16>
    %84 = vector.shape_cast %81 : vector<14x16x128xbf16> to vector<1x14x16x128xbf16>
    tpu.vector_store %arg6[%c0_7, %c0_8, %c0_9, %c0_10], %84 {strides = array<i32>} : memref<1x14x16x128xbf16, #tpu.memory_space<vmem>>, vector<1x14x16x128xbf16>,
    %85 = tpu.iota {dimensions = array<i32: 0>} : vector<16x1xi32>
    %c10_i32 = arith.constant 10 : i32
    %86 = vector.broadcast %c10_i32 : i32 to vector<16x1xi32>
    %87 = arith.cmpi slt, %85, %86 : vector<16x1xi32>
    %88 = arith.extui %87 : vector<16x1xi1> to vector<16x1xi32>
    %89 = arith.sitofp %88 : vector<16x1xi32> to vector<16x1xf32>
    %cst_11 = arith.constant dense<0.000000e+00> : vector<16x128xf32>
    %90 = vector.multi_reduction <add>, %80, %cst_11 [0] : vector<14x16x128xf32> to vector<16x128xf32>
    %91 = arith.mulf %80, %80 : vector<14x16x128xf32>
    %cst_12 = arith.constant dense<0.000000e+00> : vector<16x128xf32>
    %92 = vector.multi_reduction <add>, %91, %cst_12 [0] : vector<14x16x128xf32> to vector<16x128xf32>
    %93 = vector.broadcast %89 : vector<16x1xf32> to vector<16x128xf32>
    %94 = arith.mulf %90, %93 : vector<16x128xf32>
    %cst_13 = arith.constant dense<0.000000e+00> : vector<128xf32>
    %95 = vector.multi_reduction <add>, %94, %cst_13 [0] : vector<16x128xf32> to vector<128xf32>
    %96 = vector.shape_cast %95 : vector<128xf32> to vector<1x128xf32>
    %97 = vector.broadcast %89 : vector<16x1xf32> to vector<16x128xf32>
    %98 = arith.mulf %92, %97 : vector<16x128xf32>
    %cst_14 = arith.constant dense<0.000000e+00> : vector<128xf32>
    %99 = vector.multi_reduction <add>, %98, %cst_14 [0] : vector<16x128xf32> to vector<128xf32>
    %100 = vector.shape_cast %99 : vector<128xf32> to vector<1x128xf32>
    %c14_i32_15 = arith.constant 14 : i32
    %101 = arith.muli %arg1, %c14_i32_15 : i32
    %c0_16 = arith.constant 0 : index
    %102 = arith.index_cast %101 : i32 to index
    %c0_17 = arith.constant 0 : index
    %c0_18 = arith.constant 0 : index
    %103 = vector.load %arg2[%c0_16, %102, %c0_17, %c0_18] : memref<1x16x16x128xbf16, #tpu.memory_space<vmem>>, vector<1x14x16x128xbf16>
    %104 = vector.shape_cast %103 : vector<1x14x16x128xbf16> to vector<14x16x128xbf16>
    %105 = vector.shape_cast %104 : vector<14x16x128xbf16> to vector<224x128xbf16>
    %c0_19 = arith.constant 0 : index
    %c0_20 = arith.constant 0 : index
    %106 = vector.load %arg5[%c0_19, %c0_20] : memref<128x128xbf16, #tpu.memory_space<vmem>>, vector<128x128xbf16>
    %cst_21 = arith.constant dense<0.000000e+00> : vector<224x128xf32>
    %107 = tpu.matmul %105, %106, %cst_21 {dimension_numbers = #tpu.dot_dimension_numbers<[1], [0], [0], [1], [0, 0, 1, 1], [], []>} : vector<224x128xbf16>, vector<128x128xbf16>, vector<224x128xf32> -> vector<224x128xf32>
    %cst_22 = arith.constant dense<0.000000e+00> : vector<128xf32>
    %108 = vector.multi_reduction <add>, %107, %cst_22 [0] : vector<224x128xf32> to vector<128xf32>
    %109 = vector.shape_cast %108 : vector<128xf32> to vector<1x128xf32>
    %110 = arith.mulf %107, %107 : vector<224x128xf32>
    %cst_23 = arith.constant dense<0.000000e+00> : vector<128xf32>
    %111 = vector.multi_reduction <add>, %110, %cst_23 [0] : vector<224x128xf32> to vector<128xf32>
    %112 = vector.shape_cast %111 : vector<128xf32> to vector<1x128xf32>
    %113 = tpu.concatenate %96, %100, %109, %112 in 0 : vector<1x128xf32>, vector<1x128xf32>, vector<1x128xf32>, vector<1x128xf32> -> vector<4x128xf32>
    %c0_24 = arith.constant 0 : index
    %c0_25 = arith.constant 0 : index
    %c0_26 = arith.constant 0 : index
    %c0_27 = arith.constant 0 : index
    %114 = vector.load %arg7[%c0_24, %c0_25, %c0_26, %c0_27] : memref<1x1x4x128xf32, #tpu.memory_space<vmem>>, vector<1x1x4x128xf32>
    %115 = vector.shape_cast %114 : vector<1x1x4x128xf32> to vector<4x128xf32>
    %116 = vector.shape_cast %113 : vector<4x128xf32> to vector<1x1x4x128xf32>
    tpu.vector_store %arg7[%c0_24, %c0_25, %c0_26, %c0_27], %116 {strides = array<i32>} : memref<1x1x4x128xf32, #tpu.memory_space<vmem>>, vector<1x1x4x128xf32>,
    %c0_i32 = arith.constant 0 : i32
    %117 = arith.cmpi eq, %arg1, %c0_i32 : i32
    %118 = arith.extui %117 : i1 to i32
    %c0_i32_28 = arith.constant 0 : i32
    %119 = arith.cmpi ne, %118, %c0_i32_28 : i32
    scf.if %119 {
      %c14_i32_29 = arith.constant 14 : i32
      %120 = arith.muli %arg1, %c14_i32_29 : i32
      %c14_i32_30 = arith.constant 14 : i32
      %121 = arith.addi %120, %c14_i32_30 : i32
      %c0_31 = arith.constant 0 : index
      %122 = arith.index_cast %121 : i32 to index
      %c0_32 = arith.constant 0 : index
      %c0_33 = arith.constant 0 : index
      %123 = vector.load %arg2[%c0_31, %122, %c0_32, %c0_33] : memref<1x16x16x128xbf16, #tpu.memory_space<vmem>>, vector<1x2x16x128xbf16>
      %124 = vector.shape_cast %123 : vector<1x2x16x128xbf16> to vector<2x16x128xbf16>
      %125 = vector.shape_cast %124 : vector<2x16x128xbf16> to vector<32x128xbf16>
      %c0_34 = arith.constant 0 : index
      %c0_35 = arith.constant 0 : index
      %126 = vector.load %arg5[%c0_34, %c0_35] : memref<128x128xbf16, #tpu.memory_space<vmem>>, vector<128x128xbf16>
      %cst_36 = arith.constant dense<0.000000e+00> : vector<32x128xf32>
      %127 = tpu.matmul %125, %126, %cst_36 {dimension_numbers = #tpu.dot_dimension_numbers<[1], [0], [0], [1], [0, 0, 1, 1], [], []>} : vector<32x128xbf16>, vector<128x128xbf16>, vector<32x128xf32> -> vector<32x128xf32>
      %cst_37 = arith.constant dense<0.000000e+00> : vector<128xf32>
      %128 = vector.multi_reduction <add>, %127, %cst_37 [0] : vector<32x128xf32> to vector<128xf32>
      %129 = vector.shape_cast %128 : vector<128xf32> to vector<1x128xf32>
      %130 = arith.mulf %127, %127 : vector<32x128xf32>
      %cst_38 = arith.constant dense<0.000000e+00> : vector<128xf32>
      %131 = vector.multi_reduction <add>, %130, %cst_38 [0] : vector<32x128xf32> to vector<128xf32>
      %132 = vector.shape_cast %131 : vector<128xf32> to vector<1x128xf32>
      %cst_39 = arith.constant 0.000000e+00 : f32
      %133 = vector.broadcast %cst_39 : f32 to vector<2x128xf32>
      %c0_40 = arith.constant 0 : index
      %c0_41 = arith.constant 0 : index
      %c0_42 = arith.constant 0 : index
      %c0_43 = arith.constant 0 : index
      %134 = vector.load %arg7[%c0_40, %c0_41, %c0_42, %c0_43] : memref<1x1x4x128xf32, #tpu.memory_space<vmem>>, vector<1x1x4x128xf32>
      %135 = vector.shape_cast %134 : vector<1x1x4x128xf32> to vector<4x128xf32>
      %136 = tpu.concatenate %133, %129, %132 in 0 : vector<2x128xf32>, vector<1x128xf32>, vector<1x128xf32> -> vector<4x128xf32>
      %137 = arith.addf %135, %136 : vector<4x128xf32>
      %c0_44 = arith.constant 0 : index
      %c0_45 = arith.constant 0 : index
      %c0_46 = arith.constant 0 : index
      %c0_47 = arith.constant 0 : index
      %138 = vector.load %arg7[%c0_44, %c0_45, %c0_46, %c0_47] : memref<1x1x4x128xf32, #tpu.memory_space<vmem>>, vector<1x1x4x128xf32>
      %139 = vector.shape_cast %138 : vector<1x1x4x128xf32> to vector<4x128xf32>
      %140 = vector.shape_cast %137 : vector<4x128xf32> to vector<1x1x4x128xf32>
      tpu.vector_store %arg7[%c0_44, %c0_45, %c0_46, %c0_47], %140 {strides = array<i32>} : memref<1x1x4x128xf32, #tpu.memory_space<vmem>>, vector<1x1x4x128xf32>,
    } else {
    }
    return
  }
  func.func @transform_0(%arg0: i32, %arg1: i32) -> (i32, i32, i32, i32) {
    %c0_i32 = arith.constant 0 : i32
    %c0_i32_0 = arith.constant 0 : i32
    %c0_i32_1 = arith.constant 0 : i32
    %c0_i32_2 = arith.constant 0 : i32
    return %arg0, %c0_i32, %c0_i32_0, %c0_i32_1 : i32, i32, i32, i32
  }
  func.func @transform_1(%arg0: i32, %arg1: i32) -> (i32, i32) {
    %c0_i32 = arith.constant 0 : i32
    %c0_i32_0 = arith.constant 0 : i32
    %c0_i32_1 = arith.constant 0 : i32
    return %c0_i32, %c0_i32_0 : i32, i32
  }
  func.func @transform_2(%arg0: i32, %arg1: i32) -> (i32, i32) {
    %c0_i32 = arith.constant 0 : i32
    %c0_i32_0 = arith.constant 0 : i32
    %c0_i32_1 = arith.constant 0 : i32
    return %c0_i32, %c0_i32_0 : i32, i32
  }
  func.func @transform_3(%arg0: i32, %arg1: i32) -> (i32, i32) {
    %c0_i32 = arith.constant 0 : i32
    %c0_i32_0 = arith.constant 0 : i32
    %c0_i32_1 = arith.constant 0 : i32
    return %c0_i32, %c0_i32_0 : i32, i32
  }
  func.func @transform_4(%arg0: i32, %arg1: i32) -> (i32, i32, i32, i32) {
    %c0_i32 = arith.constant 0 : i32
    %c0_i32_0 = arith.constant 0 : i32
    %c0_i32_1 = arith.constant 0 : i32
    return %arg0, %arg1, %c0_i32, %c0_i32_0 : i32, i32, i32, i32
  }
  func.func @transform_5(%arg0: i32, %arg1: i32) -> (i32, i32, i32, i32) {
    %c0_i32 = arith.constant 0 : i32
    %c0_i32_0 = arith.constant 0 : i32
    %c0_i32_1 = arith.constant 0 : i32
    return %arg0, %arg1, %c0_i32, %c0_i32_0 : i32, i32, i32, i32
  }
}

</mosaic_0001>

<llo_original>
// kernel: tpu_custom_call.1
$region0: #{tpu_custom_call.1}
  #allocation0 [shape = 'u32[]', space=smem, size = 0x4, offset = 0x4, fixed_abs, tag = 'smem constant byte address 0x4 - core index']
  #allocation1 [shape = 'u32[144,128]{1,0:T(1,128)}', space=vmem, size = 0x12000, scoped, tag = 'internal scratch']
  %s0 = inlined_call_operand.hbm [shape: f32[2,16,128], index: 0, kind: input, shape index: {}]
  %s1 = inlined_call_operand.hbm [shape: f32[2,16,128], index: 1, kind: output, shape index: {}]
  %s2 = sld [smem:[#allocation0]]
  $region18: #{tpu_custom_call.1} parent=0
    _
  %s4 = ssub.s32 1, %s2
  %s5 = scalar_select 0, %s4, %s2
  $region1: #{tpu_custom_call.1} parent=0
    #allocation2 [shape = 'u8[16384]{0}', space=vmem, size = 0x4000, scoped, tag = 'input window, operand 0, single buffered']
    #allocation3 [shape = 's32[1]{0}', space=sflag, size = 0x4, scoped, tag = 'scoped memory for tpu_custom_call.1']
    #allocation4 [shape = 's32[1]{0}', space=sflag, size = 0x4, scoped, tag = 'scoped memory for tpu_custom_call.1']
    #allocation5 [shape = 'u8[16384]{0}', space=vmem, size = 0x4000, scoped, tag = 'output window, operand 0, single buffered']
    %6 = vsyncpa [#allocation3], 0
    %7 = vsyncpa [#allocation4], 0
    // Predicated region
    $region2: #{tpu_custom_call.1} parent=1 // pred_check
      _
    $region3: #{tpu_custom_call.1} parent=1 // pred_check_branch
      %9 = sbr.rel (0) target = $region5
    $region4: #{tpu_custom_call.1} parent=1 // pred_region
      %s11 = ssub.s32 512, 512
      %12 = vsyncadd [#allocation3], %s11
      %s13 = sshll.u32 [#allocation2], 4
      %s14 = int_to_ptr.vmem [resolvable:$true] %s13
      %19 = dma.hbm_to_vmem [thread:$0]  %s0, 512, %s14, [#allocation3], 128, 128, 8
    $region5: #{tpu_custom_call.1} parent=1 // pred_fallthru
      _
    // Predicated region
    $region6: #{tpu_custom_call.1} parent=1 // pred_check
      _
    $region7: #{tpu_custom_call.1} parent=1 // pred_check_branch
      %21 = sbr.rel (0) target = $region9
    $region8: #{tpu_custom_call.1} parent=1 // pred_region
      %22 = dma.done [#allocation3], 512
    $region9: #{tpu_custom_call.1} parent=1 // pred_fallthru
      _
    %v23 = vld [vmem:[#allocation2] sm:$0xff]
    %v24 = vld [vmem:[#allocation2 + $0x8] sm:$0xff]
    %v25 = vld [vmem:[#allocation2 + $0x10] sm:$0xff]
    %v26 = vld [vmem:[#allocation2 + $0x18] sm:$0xff]
    %v27 = vrot.slane %v23, 7
    %v28 = vrot.slane %v25, 7
    %v29 = vrot.slane %v24, 7
    %v30 = vrot.slane %v26, 7
    %v31 = vlaneseq
    %v32 = vshrl.u32 %v31, 7
    %vm33 = vcmp.lt.s32.totalorder %v32, 1
    %v34 = vsel %vm33, %v27, %v29
    %v35 = vsel %vm33, %v28, %v30
    %v36 = vsel %vm33, %v29, %v27
    %v37 = vsel %vm33, %v30, %v28
    %38 = vst [vmem:[#allocation5] sm:$0xff] %v36
    %39 = vst [vmem:[#allocation5 + $0x8] sm:$0xff] %v34
    %40 = vst [vmem:[#allocation5 + $0x10] sm:$0xff] %v37
    %41 = vst [vmem:[#allocation5 + $0x18] sm:$0xff] %v35
    // Predicated region
    $region10: #{tpu_custom_call.1} parent=1 // pred_check
      _
    $region11: #{tpu_custom_call.1} parent=1 // pred_check_branch
      %43 = sbr.rel (0) target = $region13
    $region12: #{tpu_custom_call.1} parent=1 // pred_region
      %s45 = ssub.s32 512, 512
      %46 = vsyncadd [#allocation4], %s45
      %s47 = sshll.u32 [#allocation5], 4
      %s48 = int_to_ptr.vmem [resolvable:$true] %s47
      %53 = dma.vmem_to_hbm [thread:$0]  %s48, 512, %s1, [#allocation4], 128, 128, 8
    $region13: #{tpu_custom_call.1} parent=1 // pred_fallthru
      _
    // Predicated region
    $region14: #{tpu_custom_call.1} parent=1 // pred_check
      _
    $region15: #{tpu_custom_call.1} parent=1 // pred_check_branch
      %55 = sbr.rel (0) target = $region17
    $region16: #{tpu_custom_call.1} parent=1 // pred_region
      %56 = dma.done [#allocation4], 512
    $region17: #{tpu_custom_call.1} parent=1 // pred_fallthru
      _
    %57 = vsyncpa [#allocation3], 1
    %58 = vsyncpa [#allocation4], 1

// kernel: tpu_custom_call.1
$region0: #{tpu_custom_call.1}
  #allocation0 [shape = 'u32[]', space=smem, size = 0x4, offset = 0x4, fixed_abs, tag = 'smem constant byte address 0x4 - core index']
  #allocation1 [shape = 'u32[144,128]{1,0:T(1,128)}', space=vmem, size = 0x12000, scoped, tag = 'internal scratch']
  %s0 = inlined_call_operand.hbm [shape: bf16[2,16,16,128], index: 0, kind: input, shape index: {}]
  %s1 = inlined_call_operand.hbm [shape: f32[9,128], index: 1, kind: input, shape index: {}]
  %s2 = inlined_call_operand.hbm [shape: bf16[128,128], index: 2, kind: input, shape index: {}]
  %s3 = inlined_call_operand.hbm [shape: bf16[128,128], index: 3, kind: input, shape index: {}]
  %s4 = inlined_call_operand.hbm [shape: bf16[2,14,16,128], index: 4, kind: output, shape index: {0}]
  %s5 = inlined_call_operand.hbm [shape: f32[2,1,4,128], index: 5, kind: output, shape index: {1}]
  %6 = xla_tuple %s4, %s5
  %s7 = sld [smem:[#allocation0]]
  $region77: #{tpu_custom_call.1} parent=0
    _
  %s9 = ssub.s32 1, %s7
  %s10 = scalar_select 0, %s9, %s7
  $region1: #{tpu_custom_call.1} parent=0
    #allocation2 [shape = 'u8[131072]{0}', space=vmem, size = 0x20000, scoped, tag = 'input window, operand 0']
    #allocation3 [shape = 's32[2]{0}', space=sflag, size = 0x8, scoped, tag = 'scoped memory for tpu_custom_call.1']
    #allocation4 [shape = 's32[2]{0}', space=sflag, size = 0x8, scoped, tag = 'scoped memory for tpu_custom_call.1']
    #allocation5 [shape = 'u8[8192]{0}', space=vmem, size = 0x2000, scoped, tag = 'input window, operand 1, single buffered']
    #allocation6 [shape = 's32[1]{0}', space=sflag, size = 0x4, scoped, tag = 'scoped memory for tpu_custom_call.1']
    #allocation7 [shape = 'u8[32768]{0}', space=vmem, size = 0x8000, scoped, tag = 'input window, operand 2, single buffered']
    #allocation8 [shape = 'u8[32768]{0}', space=vmem, size = 0x8000, scoped, tag = 'input window, operand 3, single buffered']
    #allocation9 [shape = 's32[1]{0}', space=sflag, size = 0x4, scoped, tag = 'scoped memory for tpu_custom_call.1']
    #allocation10 [shape = 'u8[114688]{0}', space=vmem, size = 0x1c000, scoped, tag = 'output window, operand 0']
    #allocation11 [shape = 'u8[4096]{0}', space=vmem, size = 0x1000, scoped, tag = 'output window, operand 1']
    #allocation12 [shape = 's32[2]{0}', space=sflag, size = 0x8, scoped, tag = 'scoped memory for tpu_custom_call.1']
    %11 = vsyncpa [#allocation3], 0
    %s12 = scalar_lea.sflag [#allocation3], 1
    %13 = vsyncpa %s12, 0
    %14 = vsyncpa [#allocation6], 0
    %15 = vsyncpa [#allocation9], 0
    %16 = vsyncpa [#allocation4], 0
    %s17 = scalar_lea.sflag [#allocation4], 1
    %18 = vsyncpa %s17, 0
    %19 = vsyncpa [#allocation12], 0
    %s20 = scalar_lea.sflag [#allocation12], 1
    %21 = vsyncpa %s20, 0
    loop: start=0, step=1, limit=4
    $region2: #{tpu_custom_call.1} parent=1 // loop_pre_header
      _
    $region3: #{tpu_custom_call.1} parent=1 // loop_header
      %s23 = sphi 0, %s27
      %p24 = scmp.ge.s32.totalorder %s23, 4
      %s30 = sphi 0, %s42
      %s31 = sphi 0, %s38
      %s32 = sphi 0, %s30
      %s33 = sphi 0, %s31
      %s34 = sphi 0, %s32
      %s35 = sphi 0, %s33
      %s45 = sphi 0, %s47
      %s48 = sphi 0, %s45
      %s49 = sphi 0, %s48
      %s65 = sphi 0, %s49
      %s69 = sphi 0, %s69
      %s71 = sphi 0, %s69
      %s72 = sphi 0, %s71
      %s86 = sphi 0, %s72
      %s90 = sphi 0, %s90
      %s92 = sphi 0, %s90
      %s93 = sphi 0, %s92
      %s107 = sphi 0, %s93
      %s111 = sphi 0, %s111
      %s113 = sphi 0, %s111
      %s114 = sphi 0, %s113
      %s128 = sphi 0, %s114
      %s136 = sphi 0, %s138
      %s139 = sphi 0, %s136
      %s140 = sphi 0, %s139
      %s156 = sphi 0, %s140
      %s164 = sphi 0, %s166
      %s167 = sphi 0, %s164
      %s168 = sphi 0, %s167
      %s184 = sphi 0, %s168
    $region4: #{tpu_custom_call.1} parent=1 // loop_header_branch
      %26 = sbr.rel (%p24) target = $region8
    $region5: #{tpu_custom_call.1} parent=1 // loop_body
      %s28 = ssub.s32 %s23, 1
      %s29 = ssub.s32 %s23, 2
      %s36 = sadd.s32 1, %s31
      %p37 = scmp.ge.s32.totalorder %s36, 1
      %s38 = scalar_select %p37, 0, %s36
      %s39 = sadd.s32 1, %s30
      %s40 = scalar_select %p37, %s39, %s30
      %p41 = scmp.ge.s32.totalorder %s40, 2
      %s42 = scalar_select %p41, 0, %s40
      %s43 = ssub.s32 %s30, %s42
      %p44 = scmp.eq.s32.totalorder %s43, 0
      %s46 = sadd.s32 %s45, 1
      %s47 = scalar_select %p44, %s45, %s46
      %p50 = pneg %p44
      %p51 = scmp.eq.s32.totalorder %s23, 1
      %p52 = por %p50, %p51
      %p53 = scmp.ne.s32.totalorder %s45, %s48
      %p54 = scmp.eq.s32.totalorder %s23, 0
      %p55 = por %p53, %p54
      %p56 = scmp.ne.s32.totalorder %s45, %s48
      %p57 = scmp.eq.s32.totalorder %s28, 1
      %p58 = por %p56, %p57
      %p59 = scmp.ne.s32.totalorder %s48, %s49
      %p60 = scmp.eq.s32.totalorder %s28, 0
      %p61 = por %p59, %p60
      %p62 = scmp.ne.s32.totalorder %s48, %s49
      %p63 = scmp.eq.s32.totalorder %s29, 1
      %p64 = por %p62, %p63
      %p66 = scmp.ne.s32.totalorder %s49, %s65
      %p67 = scmp.eq.s32.totalorder %s29, 0
      %p68 = por %p66, %p67
      %s70 = sadd.s32 %s69, 1
      %p73 = scmp.eq.s32.totalorder %s23, 1
      %p74 = scmp.ne.s32.totalorder %s69, %s71
      %p75 = scmp.eq.s32.totalorder %s23, 0
      %p76 = por %p74, %p75
      %p77 = scmp.ne.s32.totalorder %s69, %s71
      %p78 = scmp.eq.s32.totalorder %s28, 1
      %p79 = por %p77, %p78
      %p80 = scmp.ne.s32.totalorder %s71, %s72
      %p81 = scmp.eq.s32.totalorder %s28, 0
      %p82 = por %p80, %p81
      %p83 = scmp.ne.s32.totalorder %s71, %s72
      %p84 = scmp.eq.s32.totalorder %s29, 1
      %p85 = por %p83, %p84
      %p87 = scmp.ne.s32.totalorder %s72, %s86
      %p88 = scmp.eq.s32.totalorder %s29, 0
      %p89 = por %p87, %p88
      %s91 = sadd.s32 %s90, 1
      %p94 = scmp.eq.s32.totalorder %s23, 1
      %p95 = scmp.ne.s32.totalorder %s90, %s92
      %p96 = scmp.eq.s32.totalorder %s23, 0
      %p97 = por %p95, %p96
      %p98 = scmp.ne.s32.totalorder %s90, %s92
      %p99 = scmp.eq.s32.totalorder %s28, 1
      %p100 = por %p98, %p99
      %p101 = scmp.ne.s32.totalorder %s92, %s93
      %p102 = scmp.eq.s32.totalorder %s28, 0
      %p103 = por %p101, %p102
      %p104 = scmp.ne.s32.totalorder %s92, %s93
      %p105 = scmp.eq.s32.totalorder %s29, 1
      %p106 = por %p104, %p105
      %p108 = scmp.ne.s32.totalorder %s93, %s107
      %p109 = scmp.eq.s32.totalorder %s29, 0
      %p110 = por %p108, %p109
      %s112 = sadd.s32 %s111, 1
      %p115 = scmp.eq.s32.totalorder %s23, 1
      %p116 = scmp.ne.s32.totalorder %s111, %s113
      %p117 = scmp.eq.s32.totalorder %s23, 0
      %p118 = por %p116, %p117
      %p119 = scmp.ne.s32.totalorder %s111, %s113
      %p120 = scmp.eq.s32.totalorder %s28, 1
      %p121 = por %p119, %p120
      %p122 = scmp.ne.s32.totalorder %s113, %s114
      %p123 = scmp.eq.s32.totalorder %s28, 0
      %p124 = por %p122, %p123
      %p125 = scmp.ne.s32.totalorder %s113, %s114
      %p126 = scmp.eq.s32.totalorder %s29, 1
      %p127 = por %p125, %p126
      %p129 = scmp.ne.s32.totalorder %s114, %s128
      %p130 = scmp.eq.s32.totalorder %s29, 0
      %p131 = por %p129, %p130
      %s132 = ssub.s32 %s30, %s42
      %s133 = ssub.s32 %s31, %s38
      %s134 = sor.u32 %s132, %s133
      %p135 = scmp.eq.s32.totalorder %s134, 0
      %s137 = sadd.s32 %s136, 1
      %s138 = scalar_select %p135, %s136, %s137
      %p141 = pneg %p135
      %p142 = scmp.eq.s32.totalorder %s23, 1
      %p143 = por %p141, %p142
      %p144 = scmp.ne.s32.totalorder %s136, %s139
      %p145 = scmp.eq.s32.totalorder %s23, 0
      %p146 = por %p144, %p145
      %p147 = scmp.ne.s32.totalorder %s136, %s139
      %p148 = scmp.eq.s32.totalorder %s28, 1
      %p149 = por %p147, %p148
      %p150 = scmp.ne.s32.totalorder %s139, %s140
      %p151 = scmp.eq.s32.totalorder %s28, 0
      %p152 = por %p150, %p151
      %p153 = scmp.ne.s32.totalorder %s139, %s140
      %p154 = scmp.eq.s32.totalorder %s29, 1
      %p155 = por %p153, %p154
      %p157 = scmp.ne.s32.totalorder %s140, %s156
      %p158 = scmp.eq.s32.totalorder %s29, 0
      %p159 = por %p157, %p158
      %s160 = ssub.s32 %s30, %s42
      %s161 = ssub.s32 %s31, %s38
      %s162 = sor.u32 %s160, %s161
      %p163 = scmp.eq.s32.totalorder %s162, 0
      %s165 = sadd.s32 %s164, 1
      %s166 = scalar_select %p163, %s164, %s165
      %p169 = pneg %p163
      %p170 = scmp.eq.s32.totalorder %s23, 1
      %p171 = por %p169, %p170
      %p172 = scmp.ne.s32.totalorder %s164, %s167
      %p173 = scmp.eq.s32.totalorder %s23, 0
      %p174 = por %p172, %p173
      %p175 = scmp.ne.s32.totalorder %s164, %s167
      %p176 = scmp.eq.s32.totalorder %s28, 1
      %p177 = por %p175, %p176
      %p178 = scmp.ne.s32.totalorder %s167, %s168
      %p179 = scmp.eq.s32.totalorder %s28, 0
      %p180 = por %p178, %p179
      %p181 = scmp.ne.s32.totalorder %s167, %s168
      %p182 = scmp.eq.s32.totalorder %s29, 1
      %p183 = por %p181, %p182
      %p185 = scmp.ne.s32.totalorder %s168, %s184
      %p186 = scmp.eq.s32.totalorder %s29, 0
      %p187 = por %p185, %p186
      %p188 = scmp.le.s32.totalorder 1, %s23
      %p189 = scmp.lt.s32.totalorder %s23, 3
      %p190 = pnand %p188, %p189
      %p191 = pneg %p190
      // Predicated region
      $region9: #{tpu_custom_call.1} parent=5 // pred_check
        _
      $region10: #{tpu_custom_call.1} parent=5 // pred_check_branch
        %193 = sbr.rel (%p190) target = $region12
      $region11: #{tpu_custom_call.1} parent=5 // pred_region
        %s194 = ssub.s32 %s23, 1
        // Predicated region
        $region13: #{tpu_custom_call.1} parent=11 // pred_check
          %p195 = pneg %p82
        $region14: #{tpu_custom_call.1} parent=11 // pred_check_branch
          %197 = sbr.rel (%p195) target = $region16
        $region15: #{tpu_custom_call.1} parent=11 // pred_region
          %s199 = ssub.s32 256, 256
          %200 = vsyncadd [#allocation6], %s199
          %s201 = sshll.u32 [#allocation5], 4
          %s202 = int_to_ptr.vmem [resolvable:$true] %s201
          %207 = dma.hbm_to_vmem [thread:$0]  %s1, 256, %s202, [#allocation6], 128, 128, 8
        $region16: #{tpu_custom_call.1} parent=11 // pred_fallthru
          _
        // Predicated region
        $region17: #{tpu_custom_call.1} parent=11 // pred_check
          %p208 = pneg %p103
        $region18: #{tpu_custom_call.1} parent=11 // pred_check_branch
          %210 = sbr.rel (%p208) target = $region20
        $region19: #{tpu_custom_call.1} parent=11 // pred_region
          %s212 = ssub.s32 1024, 1024
          %213 = vsyncadd [#allocation6], %s212
          %s214 = sshll.u32 [#allocation7], 4
          %s215 = int_to_ptr.vmem [resolvable:$true] %s214
          %220 = dma.hbm_to_vmem [thread:$0]  %s2, 1024, %s215, [#allocation6], 64, 64, 4
        $region20: #{tpu_custom_call.1} parent=11 // pred_fallthru
          _
        // Predicated region
        $region21: #{tpu_custom_call.1} parent=11 // pred_check
          %p221 = pneg %p124
        $region22: #{tpu_custom_call.1} parent=11 // pred_check_branch
          %223 = sbr.rel (%p221) target = $region24
        $region23: #{tpu_custom_call.1} parent=11 // pred_region
          %s225 = ssub.s32 1024, 1024
          %226 = vsyncadd [#allocation9], %s225
          %s227 = sshll.u32 [#allocation8], 4
          %s228 = int_to_ptr.vmem [resolvable:$true] %s227
          %233 = dma.hbm_to_vmem [thread:$0]  %s3, 1024, %s228, [#allocation9], 64, 64, 4
        $region24: #{tpu_custom_call.1} parent=11 // pred_fallthru
          _
      $region12: #{tpu_custom_call.1} parent=5 // pred_fallthru
        _
      %p234 = scmp.lt.s32.totalorder %s23, 2
      // Predicated region
      $region25: #{tpu_custom_call.1} parent=5 // pred_check
        %p235 = pneg %p234
      $region26: #{tpu_custom_call.1} parent=5 // pred_check_branch
        %237 = sbr.rel (%p235) target = $region28
      $region27: #{tpu_custom_call.1} parent=5 // pred_region
        // Predicated region
        $region29: #{tpu_custom_call.1} parent=27 // pred_check
          %p238 = pneg %p55
        $region30: #{tpu_custom_call.1} parent=27 // pred_check_branch
          %240 = sbr.rel (%p238) target = $region32
        $region31: #{tpu_custom_call.1} parent=27 // pred_region
          %s241 = sand.u32 %s45, 1
          %s242 = scalar_lea.sflag [#allocation3], %s241
          %s243 = sand.u32 %s45, 1
          %s244 = smul.addr %s243, 128
          %s245 = scalar_lea.vmem [#allocation2], %s244
          %s247 = ssub.s32 2048, 2048
          %248 = vsyncadd %s242, %s247
          %s249 = smul.addr %s30, 32
          %s250 = smul.addr %s249, 64
          %s251 = scalar_lea.hbm %s0, %s250
          %s252 = sshll.u32 %s245, 4
          %s253 = int_to_ptr.vmem [resolvable:$true] %s252
          %258 = dma.hbm_to_vmem [thread:$0]  %s251, 2048, %s253, %s242, 64, 64, 4
        $region32: #{tpu_custom_call.1} parent=27 // pred_fallthru
          _
      $region28: #{tpu_custom_call.1} parent=5 // pred_fallthru
        _
      %p259 = scmp.le.s32.totalorder 1, %s23
      %p260 = scmp.lt.s32.totalorder %s23, 3
      %p261 = pnand %p259, %p260
      %p262 = pneg %p261
      // Predicated region
      $region33: #{tpu_custom_call.1} parent=5 // pred_check
        _
      $region34: #{tpu_custom_call.1} parent=5 // pred_check_branch
        %264 = sbr.rel (%p261) target = $region36
      $region35: #{tpu_custom_call.1} parent=5 // pred_region
        %s265 = ssub.s32 %s23, 1
        %s266 = sand.u32 %s48, 1
        %s267 = scalar_lea.sflag [#allocation3], %s266
        %s268 = sand.u32 %s48, 1
        %s269 = smul.addr %s268, 128
        %s270 = scalar_lea.vmem [#allocation2], %s269
        // Predicated region
        $region37: #{tpu_custom_call.1} parent=35 // pred_check
          %p271 = pneg %p61
        $region38: #{tpu_custom_call.1} parent=35 // pred_check_branch
          %273 = sbr.rel (%p271) target = $region40
        $region39: #{tpu_custom_call.1} parent=35 // pred_region
          %274 = dma.done %s267, 2048
        $region40: #{tpu_custom_call.1} parent=35 // pred_fallthru
          _
        // Predicated region
        $region41: #{tpu_custom_call.1} parent=35 // pred_check
          %p275 = pneg %p82
        $region42: #{tpu_custom_call.1} parent=35 // pred_check_branch
          %277 = sbr.rel (%p275) target = $region44
        $region43: #{tpu_custom_call.1} parent=35 // pred_region
          %278 = dma.done [#allocation6], 256
        $region44: #{tpu_custom_call.1} parent=35 // pred_fallthru
          _
        // Predicated region
        $region45: #{tpu_custom_call.1} parent=35 // pred_check
          %p279 = pneg %p103
        $region46: #{tpu_custom_call.1} parent=35 // pred_check_branch
          %281 = sbr.rel (%p279) target = $region48
        $region47: #{tpu_custom_call.1} parent=35 // pred_region
          %282 = dma.done [#allocation6], 1024
        $region48: #{tpu_custom_call.1} parent=35 // pred_fallthru
          _
        // Predicated region
        $region49: #{tpu_custom_call.1} parent=35 // pred_check
          %p283 = pneg %p124
        $region50: #{tpu_custom_call.1} parent=35 // pred_check_branch
          %285 = sbr.rel (%p283) target = $region52
        $region51: #{tpu_custom_call.1} parent=35 // pred_region
          %286 = dma.done [#allocation9], 1024
        $region52: #{tpu_custom_call.1} parent=35 // pred_fallthru
          _
        %s287 = sand.u32 %s48, 1
        %s288 = scalar_lea.sflag [#allocation3], %s287
        %s289 = sand.u32 %s48, 1
        %s290 = smul.addr %s289, 128
        %s291 = scalar_lea.vmem [#allocation2], %s290
        %p292 = pneg %p61
        %p293 = pneg %p58
        %p294 = pneg %p82
        %p295 = pneg %p79
        %p296 = pneg %p103
        %p297 = pneg %p100
        %p298 = pneg %p124
        %p299 = pneg %p121
        %p300 = pneg %p152
        %p301 = pneg %p149
        %s302 = sand.u32 %s139, 1
        %s303 = scalar_lea.sflag [#allocation4], %s302
        %s304 = sand.u32 %s139, 1
        %s305 = smul.addr %s304, 112
        %s306 = scalar_lea.vmem [#allocation10], %s305
        %p307 = pneg %p180
        %p308 = pneg %p177
        %s309 = sand.u32 %s167, 1
        %s310 = scalar_lea.sflag [#allocation12], %s309
        %s311 = sand.u32 %s167, 1
        %s312 = smul.addr %s311, 4
        %s313 = scalar_lea.vmem [#allocation11], %s312
        %s314 = smul.u32 14, %s33
        %s316 = smul.u32 %s33, 14
        %s317 = smul.u32 %s316, 2
        %s318 = smul.addr %s317, 4
        %s319 = scalar_lea.vmem %s270, %s318 [#allocation2]
        %v320 = vld [vmem:[%s319] sm:$0xf]
        %v321 = vld [vmem:[%s319 + $0x4] sm:$0xf]
        %v322 = vld [vmem:[%s319 + $0x8] sm:$0xf]
        %v323 = vld [vmem:[%s319 + $0xc] sm:$0xf]
        %v324 = vld [vmem:[%s319 + $0x10] sm:$0xf]
        %v325 = vld [vmem:[%s319 + $0x14] sm:$0xf]
        %v326 = vld [vmem:[%s319 + $0x18] sm:$0xf]
        %v327 = vld [vmem:[%s319 + $0x1c] sm:$0xf]
        %v328 = vld [vmem:[%s319 + $0x20] sm:$0xf]
        %v329 = vld [vmem:[%s319 + $0x24] sm:$0xf]
        %v330 = vld [vmem:[%s319 + $0x28] sm:$0xf]
        %v331 = vld [vmem:[%s319 + $0x2c] sm:$0xf]
        %v332 = vld [vmem:[%s319 + $0x30] sm:$0xf]
        %v333 = vld [vmem:[%s319 + $0x34] sm:$0xf]
        %v334 = vld [vmem:[%s319 + $0x38] sm:$0xf]
        %v335 = vld [vmem:[%s319 + $0x3c] sm:$0xf]
        %v336 = vld [vmem:[%s319 + $0x40] sm:$0xf]
        %v337 = vld [vmem:[%s319 + $0x44] sm:$0xf]
        %v338 = vld [vmem:[%s319 + $0x48] sm:$0xf]
        %v339 = vld [vmem:[%s319 + $0x4c] sm:$0xf]
        %v340 = vld [vmem:[%s319 + $0x50] sm:$0xf]
        %v341 = vld [vmem:[%s319 + $0x54] sm:$0xf]
        %v342 = vld [vmem:[%s319 + $0x58] sm:$0xf]
        %v343 = vld [vmem:[%s319 + $0x5c] sm:$0xf]
        %v344 = vld [vmem:[%s319 + $0x60] sm:$0xf]
        %v345 = vld [vmem:[%s319 + $0x64] sm:$0xf]
        %v346 = vld [vmem:[%s319 + $0x68] sm:$0xf]
        %v347 = vld [vmem:[%s319 + $0x6c] sm:$0xf]
        %v348 = vld [vmem:[%s319 + $0x70] sm:$0xf]
        %v349 = vld [vmem:[%s319 + $0x74] sm:$0xf]
        %v350 = vld [vmem:[%s319 + $0x78] sm:$0xf]
        %v351 = vld [vmem:[%s319 + $0x7c] sm:$0xf]
        %v352 = vunpack.c.l.bf16 %v320
        %v353 = vunpack.c.l.bf16 %v321
        %v354 = vunpack.c.l.bf16 %v322
        %v355 = vunpack.c.l.bf16 %v323
        %v356 = vunpack.c.l.bf16 %v324
        %v357 = vunpack.c.l.bf16 %v325
        %v358 = vunpack.c.l.bf16 %v326
        %v359 = vunpack.c.l.bf16 %v327
        %v360 = vunpack.c.l.bf16 %v328
        %v361 = vunpack.c.l.bf16 %v329
        %v362 = vunpack.c.l.bf16 %v330
        %v363 = vunpack.c.l.bf16 %v331
        %v364 = vunpack.c.l.bf16 %v332
        %v365 = vunpack.c.l.bf16 %v333
        %v366 = vunpack.c.l.bf16 %v334
        %v367 = vunpack.c.l.bf16 %v335
        %v368 = vunpack.c.l.bf16 %v336
        %v369 = vunpack.c.l.bf16 %v337
        %v370 = vunpack.c.l.bf16 %v338
        %v371 = vunpack.c.l.bf16 %v339
        %v372 = vunpack.c.l.bf16 %v340
        %v373 = vunpack.c.l.bf16 %v341
        %v374 = vunpack.c.l.bf16 %v342
        %v375 = vunpack.c.l.bf16 %v343
        %v376 = vunpack.c.l.bf16 %v344
        %v377 = vunpack.c.l.bf16 %v345
        %v378 = vunpack.c.l.bf16 %v346
        %v379 = vunpack.c.l.bf16 %v347
        %v380 = vunpack.c.l.bf16 %v348
        %v381 = vunpack.c.l.bf16 %v349
        %v382 = vunpack.c.l.bf16 %v350
        %v383 = vunpack.c.l.bf16 %v351
        %v384 = vmax.f32 %v352, 0.0
        %v385 = vmax.f32 %v353, 0.0
        %v386 = vmax.f32 %v354, 0.0
        %v387 = vmax.f32 %v355, 0.0
        %v388 = vmax.f32 %v356, 0.0
        %v389 = vmax.f32 %v357, 0.0
        %v390 = vmax.f32 %v358, 0.0
        %v391 = vmax.f32 %v359, 0.0
        %v392 = vmax.f32 %v360, 0.0
        %v393 = vmax.f32 %v361, 0.0
        %v394 = vmax.f32 %v362, 0.0
        %v395 = vmax.f32 %v363, 0.0
        %v396 = vmax.f32 %v364, 0.0
        %v397 = vmax.f32 %v365, 0.0
        %v398 = vmax.f32 %v366, 0.0
        %v399 = vmax.f32 %v367, 0.0
        %v400 = vmax.f32 %v368, 0.0
        %v401 = vmax.f32 %v369, 0.0
        %v402 = vmax.f32 %v370, 0.0
        %v403 = vmax.f32 %v371, 0.0
        %v404 = vmax.f32 %v372, 0.0
        %v405 = vmax.f32 %v373, 0.0
        %v406 = vmax.f32 %v374, 0.0
        %v407 = vmax.f32 %v375, 0.0
        %v408 = vmax.f32 %v376, 0.0
        %v409 = vmax.f32 %v377, 0.0
        %v410 = vmax.f32 %v378, 0.0
        %v411 = vmax.f32 %v379, 0.0
        %v412 = vmax.f32 %v380, 0.0
        %v413 = vmax.f32 %v381, 0.0
        %v414 = vmax.f32 %v382, 0.0
        %v415 = vmax.f32 %v383, 0.0
        %v416 = vld [vmem:[#allocation5] sm:$0xff]
        %v417 = vld [vmem:[#allocation5 + $0x8] sm:$0x1]
        %vm450 = vcmask 1046528
        %v451 = vrot.slane %v384, 1
        %v452 = vrot.slane %v385, 1
        %v453 = vsel %vm450, %v451, %v452
        %v454 = vrot.slane %v386, 1
        %v455 = vrot.slane %v387, 1
        %v456 = vsel %vm450, %v454, %v455
        %v457 = vrot.slane %v388, 1
        %v458 = vrot.slane %v389, 1
        %v459 = vsel %vm450, %v457, %v458
        %v460 = vrot.slane %v390, 1
        %v461 = vrot.slane %v391, 1
        %v462 = vsel %vm450, %v460, %v461
        %v463 = vrot.slane %v392, 1
        %v464 = vrot.slane %v393, 1
        %v465 = vsel %vm450, %v463, %v464
        %v466 = vrot.slane %v394, 1
        %v467 = vrot.slane %v395, 1
        %v468 = vsel %vm450, %v466, %v467
        %v469 = vrot.slane %v396, 1
        %v470 = vrot.slane %v397, 1
        %v471 = vsel %vm450, %v469, %v470
        %v472 = vrot.slane %v398, 1
        %v473 = vrot.slane %v399, 1
        %v474 = vsel %vm450, %v472, %v473
        %v475 = vrot.slane %v400, 1
        %v476 = vrot.slane %v401, 1
        %v477 = vsel %vm450, %v475, %v476
        %v478 = vrot.slane %v402, 1
        %v479 = vrot.slane %v403, 1
        %v480 = vsel %vm450, %v478, %v479
        %v481 = vrot.slane %v404, 1
        %v482 = vrot.slane %v405, 1
        %v483 = vsel %vm450, %v481, %v482
        %v484 = vrot.slane %v406, 1
        %v485 = vrot.slane %v407, 1
        %v486 = vsel %vm450, %v484, %v485
        %v487 = vrot.slane %v408, 1
        %v488 = vrot.slane %v409, 1
        %v489 = vsel %vm450, %v487, %v488
        %v490 = vrot.slane %v410, 1
        %v491 = vrot.slane %v411, 1
        %v492 = vsel %vm450, %v490, %v491
        %v493 = vrot.slane %v412, 1
        %v494 = vrot.slane %v413, 1
        %v495 = vsel %vm450, %v493, %v494
        %v496 = vrot.slane %v414, 1
        %v497 = vrot.slane %v415, 1
        %v498 = vsel %vm450, %v496, %v497
        %v547 = vsel %vm450, %v452, %v451
        %v548 = vsel %vm450, %v455, %v454
        %v549 = vsel %vm450, %v458, %v457
        %v550 = vsel %vm450, %v461, %v460
        %v551 = vsel %vm450, %v464, %v463
        %v552 = vsel %vm450, %v467, %v466
        %v553 = vsel %vm450, %v470, %v469
        %v554 = vsel %vm450, %v473, %v472
        %v555 = vsel %vm450, %v476, %v475
        %v556 = vsel %vm450, %v479, %v478
        %v557 = vsel %vm450, %v482, %v481
        %v558 = vsel %vm450, %v485, %v484
        %v559 = vsel %vm450, %v488, %v487
        %v560 = vsel %vm450, %v491, %v490
        %v561 = vsel %vm450, %v494, %v493
        %v562 = vsel %vm450, %v497, %v496
        %vm563 = vcmask 1045504
        %v564 = vrot.slane %v384, 2
        %v565 = vrot.slane %v385, 2
        %v566 = vsel %vm563, %v564, %v565
        %v567 = vrot.slane %v386, 2
        %v568 = vrot.slane %v387, 2
        %v569 = vsel %vm563, %v567, %v568
        %v570 = vrot.slane %v388, 2
        %v571 = vrot.slane %v389, 2
        %v572 = vsel %vm563, %v570, %v571
        %v573 = vrot.slane %v390, 2
        %v574 = vrot.slane %v391, 2
        %v575 = vsel %vm563, %v573, %v574
        %v576 = vrot.slane %v392, 2
        %v577 = vrot.slane %v393, 2
        %v578 = vsel %vm563, %v576, %v577
        %v579 = vrot.slane %v394, 2
        %v580 = vrot.slane %v395, 2
        %v581 = vsel %vm563, %v579, %v580
        %v582 = vrot.slane %v396, 2
        %v583 = vrot.slane %v397, 2
        %v584 = vsel %vm563, %v582, %v583
        %v585 = vrot.slane %v398, 2
        %v586 = vrot.slane %v399, 2
        %v587 = vsel %vm563, %v585, %v586
        %v588 = vrot.slane %v400, 2
        %v589 = vrot.slane %v401, 2
        %v590 = vsel %vm563, %v588, %v589
        %v591 = vrot.slane %v402, 2
        %v592 = vrot.slane %v403, 2
        %v593 = vsel %vm563, %v591, %v592
        %v594 = vrot.slane %v404, 2
        %v595 = vrot.slane %v405, 2
        %v596 = vsel %vm563, %v594, %v595
        %v597 = vrot.slane %v406, 2
        %v598 = vrot.slane %v407, 2
        %v599 = vsel %vm563, %v597, %v598
        %v600 = vrot.slane %v408, 2
        %v601 = vrot.slane %v409, 2
        %v602 = vsel %vm563, %v600, %v601
        %v603 = vrot.slane %v410, 2
        %v604 = vrot.slane %v411, 2
        %v605 = vsel %vm563, %v603, %v604
        %v606 = vrot.slane %v412, 2
        %v607 = vrot.slane %v413, 2
        %v608 = vsel %vm563, %v606, %v607
        %v609 = vrot.slane %v414, 2
        %v610 = vrot.slane %v415, 2
        %v611 = vsel %vm563, %v609, %v610
        %v660 = vsel %vm563, %v565, %v564
        %v661 = vsel %vm563, %v568, %v567
        %v662 = vsel %vm563, %v571, %v570
        %v663 = vsel %vm563, %v574, %v573
        %v664 = vsel %vm563, %v577, %v576
        %v665 = vsel %vm563, %v580, %v579
        %v666 = vsel %vm563, %v583, %v582
        %v667 = vsel %vm563, %v586, %v585
        %v668 = vsel %vm563, %v589, %v588
        %v669 = vsel %vm563, %v592, %v591
        %v670 = vsel %vm563, %v595, %v594
        %v671 = vsel %vm563, %v598, %v597
        %v672 = vsel %vm563, %v601, %v600
        %v673 = vsel %vm563, %v604, %v603
        %v674 = vsel %vm563, %v607, %v606
        %v675 = vsel %vm563, %v610, %v609
        %v676 = vlaneseq
        %v677 = vshrl.u32 %v676, 7
        %v678 = vsub.s32 0, %v677
        %v679 = vrot.slane %v416, %v678
        %v680 = vmul.f32 %v384, %v679
        %v681 = vmul.f32 %v385, %v679
        %v682 = vmul.f32 %v386, %v679
        %v683 = vmul.f32 %v387, %v679
        %v684 = vmul.f32 %v388, %v679
        %v685 = vmul.f32 %v389, %v679
        %v686 = vmul.f32 %v390, %v679
        %v687 = vmul.f32 %v391, %v679
        %v688 = vmul.f32 %v392, %v679
        %v689 = vmul.f32 %v393, %v679
        %v690 = vmul.f32 %v394, %v679
        %v691 = vmul.f32 %v395, %v679
        %v692 = vmul.f32 %v396, %v679
        %v693 = vmul.f32 %v397, %v679
        %v694 = vmul.f32 %v398, %v679
        %v695 = vmul.f32 %v399, %v679
        %v696 = vmul.f32 %v400, %v679
        %v697 = vmul.f32 %v401, %v679
        %v698 = vmul.f32 %v402, %v679
        %v699 = vmul.f32 %v403, %v679
        %v700 = vmul.f32 %v404, %v679
        %v701 = vmul.f32 %v405, %v679
        %v702 = vmul.f32 %v406, %v679
        %v703 = vmul.f32 %v407, %v679
        %v704 = vmul.f32 %v408, %v679
        %v705 = vmul.f32 %v409, %v679
        %v706 = vmul.f32 %v410, %v679
        %v707 = vmul.f32 %v411, %v679
        %v708 = vlaneseq
        %v709 = vshrl.u32 %v708, 7
        %v710 = vsub.s32 1, %v709
        %v711 = vrot.slane %v416, %v710
        %v712 = vmul.f32 %v453, %v711
        %v713 = vmul.f32 %v547, %v711
        %v714 = vmul.f32 %v456, %v711
        %v715 = vmul.f32 %v548, %v711
        %v716 = vmul.f32 %v459, %v711
        %v717 = vmul.f32 %v549, %v711
        %v718 = vmul.f32 %v462, %v711
        %v719 = vmul.f32 %v550, %v711
        %v720 = vmul.f32 %v465, %v711
        %v721 = vmul.f32 %v551, %v711
        %v722 = vmul.f32 %v468, %v711
        %v723 = vmul.f32 %v552, %v711
        %v724 = vmul.f32 %v471, %v711
        %v725 = vmul.f32 %v553, %v711
        %v726 = vmul.f32 %v474, %v711
        %v727 = vmul.f32 %v554, %v711
        %v728 = vmul.f32 %v477, %v711
        %v729 = vmul.f32 %v555, %v711
        %v730 = vmul.f32 %v480, %v711
        %v731 = vmul.f32 %v556, %v711
        %v732 = vmul.f32 %v483, %v711
        %v733 = vmul.f32 %v557, %v711
        %v734 = vmul.f32 %v486, %v711
        %v735 = vmul.f32 %v558, %v711
        %v736 = vmul.f32 %v489, %v711
        %v737 = vmul.f32 %v559, %v711
        %v738 = vmul.f32 %v492, %v711
        %v739 = vmul.f32 %v560, %v711
        %v740 = vadd.f32 %v680, %v712
        %v741 = vadd.f32 %v681, %v713
        %v742 = vadd.f32 %v682, %v714
        %v743 = vadd.f32 %v683, %v715
        %v744 = vadd.f32 %v684, %v716
        %v745 = vadd.f32 %v685, %v717
        %v746 = vadd.f32 %v686, %v718
        %v747 = vadd.f32 %v687, %v719
        %v748 = vadd.f32 %v688, %v720
        %v749 = vadd.f32 %v689, %v721
        %v750 = vadd.f32 %v690, %v722
        %v751 = vadd.f32 %v691, %v723
        %v752 = vadd.f32 %v692, %v724
        %v753 = vadd.f32 %v693, %v725
        %v754 = vadd.f32 %v694, %v726
        %v755 = vadd.f32 %v695, %v727
        %v756 = vadd.f32 %v696, %v728
        %v757 = vadd.f32 %v697, %v729
        %v758 = vadd.f32 %v698, %v730
        %v759 = vadd.f32 %v699, %v731
        %v760 = vadd.f32 %v700, %v732
        %v761 = vadd.f32 %v701, %v733
        %v762 = vadd.f32 %v702, %v734
        %v763 = vadd.f32 %v703, %v735
        %v764 = vadd.f32 %v704, %v736
        %v765 = vadd.f32 %v705, %v737
        %v766 = vadd.f32 %v706, %v738
        %v767 = vadd.f32 %v707, %v739
        %v768 = vlaneseq
        %v769 = vshrl.u32 %v768, 7
        %v770 = vsub.s32 2, %v769
        %v771 = vrot.slane %v416, %v770
        %v772 = vmul.f32 %v566, %v771
        %v773 = vmul.f32 %v660, %v771
        %v774 = vmul.f32 %v569, %v771
        %v775 = vmul.f32 %v661, %v771
        %v776 = vmul.f32 %v572, %v771
        %v777 = vmul.f32 %v662, %v771
        %v778 = vmul.f32 %v575, %v771
        %v779 = vmul.f32 %v663, %v771
        %v780 = vmul.f32 %v578, %v771
        %v781 = vmul.f32 %v664, %v771
        %v782 = vmul.f32 %v581, %v771
        %v783 = vmul.f32 %v665, %v771
        %v784 = vmul.f32 %v584, %v771
        %v785 = vmul.f32 %v666, %v771
        %v786 = vmul.f32 %v587, %v771
        %v787 = vmul.f32 %v667, %v771
        %v788 = vmul.f32 %v590, %v771
        %v789 = vmul.f32 %v668, %v771
        %v790 = vmul.f32 %v593, %v771
        %v791 = vmul.f32 %v669, %v771
        %v792 = vmul.f32 %v596, %v771
        %v793 = vmul.f32 %v670, %v771
        %v794 = vmul.f32 %v599, %v771
        %v795 = vmul.f32 %v671, %v771
        %v796 = vmul.f32 %v602, %v771
        %v797 = vmul.f32 %v672, %v771
        %v798 = vmul.f32 %v605, %v771
        %v799 = vmul.f32 %v673, %v771
        %v800 = vadd.f32 %v740, %v772
        %v801 = vadd.f32 %v741, %v773
        %v802 = vadd.f32 %v742, %v774
        %v803 = vadd.f32 %v743, %v775
        %v804 = vadd.f32 %v744, %v776
        %v805 = vadd.f32 %v745, %v777
        %v806 = vadd.f32 %v746, %v778
        %v807 = vadd.f32 %v747, %v779
        %v808 = vadd.f32 %v748, %v780
        %v809 = vadd.f32 %v749, %v781
        %v810 = vadd.f32 %v750, %v782
        %v811 = vadd.f32 %v751, %v783
        %v812 = vadd.f32 %v752, %v784
        %v813 = vadd.f32 %v753, %v785
        %v814 = vadd.f32 %v754, %v786
        %v815 = vadd.f32 %v755, %v787
        %v816 = vadd.f32 %v756, %v788
        %v817 = vadd.f32 %v757, %v789
        %v818 = vadd.f32 %v758, %v790
        %v819 = vadd.f32 %v759, %v791
        %v820 = vadd.f32 %v760, %v792
        %v821 = vadd.f32 %v761, %v793
        %v822 = vadd.f32 %v762, %v794
        %v823 = vadd.f32 %v763, %v795
        %v824 = vadd.f32 %v764, %v796
        %v825 = vadd.f32 %v765, %v797
        %v826 = vadd.f32 %v766, %v798
        %v827 = vadd.f32 %v767, %v799
        %v828 = vlaneseq
        %v829 = vshrl.u32 %v828, 7
        %v830 = vsub.s32 3, %v829
        %v831 = vrot.slane %v416, %v830
        %v832 = vmul.f32 %v386, %v831
        %v833 = vmul.f32 %v387, %v831
        %v834 = vmul.f32 %v388, %v831
        %v835 = vmul.f32 %v389, %v831
        %v836 = vmul.f32 %v390, %v831
        %v837 = vmul.f32 %v391, %v831
        %v838 = vmul.f32 %v392, %v831
        %v839 = vmul.f32 %v393, %v831
        %v840 = vmul.f32 %v394, %v831
        %v841 = vmul.f32 %v395, %v831
        %v842 = vmul.f32 %v396, %v831
        %v843 = vmul.f32 %v397, %v831
        %v844 = vmul.f32 %v398, %v831
        %v845 = vmul.f32 %v399, %v831
        %v846 = vmul.f32 %v400, %v831
        %v847 = vmul.f32 %v401, %v831
        %v848 = vmul.f32 %v402, %v831
        %v849 = vmul.f32 %v403, %v831
        %v850 = vmul.f32 %v404, %v831
        %v851 = vmul.f32 %v405, %v831
        %v852 = vmul.f32 %v406, %v831
        %v853 = vmul.f32 %v407, %v831
        %v854 = vmul.f32 %v408, %v831
        %v855 = vmul.f32 %v409, %v831
        %v856 = vmul.f32 %v410, %v831
        %v857 = vmul.f32 %v411, %v831
        %v858 = vmul.f32 %v412, %v831
        %v859 = vmul.f32 %v413, %v831
        %v860 = vadd.f32 %v800, %v832
        %v861 = vadd.f32 %v801, %v833
        %v862 = vadd.f32 %v802, %v834
        %v863 = vadd.f32 %v803, %v835
        %v864 = vadd.f32 %v804, %v836
        %v865 = vadd.f32 %v805, %v837
        %v866 = vadd.f32 %v806, %v838
        %v867 = vadd.f32 %v807, %v839
        %v868 = vadd.f32 %v808, %v840
        %v869 = vadd.f32 %v809, %v841
        %v870 = vadd.f32 %v810, %v842
        %v871 = vadd.f32 %v811, %v843
        %v872 = vadd.f32 %v812, %v844
        %v873 = vadd.f32 %v813, %v845
        %v874 = vadd.f32 %v814, %v846
        %v875 = vadd.f32 %v815, %v847
        %v876 = vadd.f32 %v816, %v848
        %v877 = vadd.f32 %v817, %v849
        %v878 = vadd.f32 %v818, %v850
        %v879 = vadd.f32 %v819, %v851
        %v880 = vadd.f32 %v820, %v852
        %v881 = vadd.f32 %v821, %v853
        %v882 = vadd.f32 %v822, %v854
        %v883 = vadd.f32 %v823, %v855
        %v884 = vadd.f32 %v824, %v856
        %v885 = vadd.f32 %v825, %v857
        %v886 = vadd.f32 %v826, %v858
        %v887 = vadd.f32 %v827, %v859
        %v888 = vlaneseq
        %v889 = vshrl.u32 %v888, 7
        %v890 = vsub.s32 4, %v889
        %v891 = vrot.slane %v416, %v890
        %v892 = vmul.f32 %v456, %v891
        %v893 = vmul.f32 %v548, %v891
        %v894 = vmul.f32 %v459, %v891
        %v895 = vmul.f32 %v549, %v891
        %v896 = vmul.f32 %v462, %v891
        %v897 = vmul.f32 %v550, %v891
        %v898 = vmul.f32 %v465, %v891
        %v899 = vmul.f32 %v551, %v891
        %v900 = vmul.f32 %v468, %v891
        %v901 = vmul.f32 %v552, %v891
        %v902 = vmul.f32 %v471, %v891
        %v903 = vmul.f32 %v553, %v891
        %v904 = vmul.f32 %v474, %v891
        %v905 = vmul.f32 %v554, %v891
        %v906 = vmul.f32 %v477, %v891
        %v907 = vmul.f32 %v555, %v891
        %v908 = vmul.f32 %v480, %v891
        %v909 = vmul.f32 %v556, %v891
        %v910 = vmul.f32 %v483, %v891
        %v911 = vmul.f32 %v557, %v891
        %v912 = vmul.f32 %v486, %v891
        %v913 = vmul.f32 %v558, %v891
        %v914 = vmul.f32 %v489, %v891
        %v915 = vmul.f32 %v559, %v891
        %v916 = vmul.f32 %v492, %v891
        %v917 = vmul.f32 %v560, %v891
        %v918 = vmul.f32 %v495, %v891
        %v919 = vmul.f32 %v561, %v891
        %v920 = vadd.f32 %v860, %v892
        %v921 = vadd.f32 %v861, %v893
        %v922 = vadd.f32 %v862, %v894
        %v923 = vadd.f32 %v863, %v895
        %v924 = vadd.f32 %v864, %v896
        %v925 = vadd.f32 %v865, %v897
        %v926 = vadd.f32 %v866, %v898
        %v927 = vadd.f32 %v867, %v899
        %v928 = vadd.f32 %v868, %v900
        %v929 = vadd.f32 %v869, %v901
        %v930 = vadd.f32 %v870, %v902
        %v931 = vadd.f32 %v871, %v903
        %v932 = vadd.f32 %v872, %v904
        %v933 = vadd.f32 %v873, %v905
        %v934 = vadd.f32 %v874, %v906
        %v935 = vadd.f32 %v875, %v907
        %v936 = vadd.f32 %v876, %v908
        %v937 = vadd.f32 %v877, %v909
        %v938 = vadd.f32 %v878, %v910
        %v939 = vadd.f32 %v879, %v911
        %v940 = vadd.f32 %v880, %v912
        %v941 = vadd.f32 %v881, %v913
        %v942 = vadd.f32 %v882, %v914
        %v943 = vadd.f32 %v883, %v915
        %v944 = vadd.f32 %v884, %v916
        %v945 = vadd.f32 %v885, %v917
        %v946 = vadd.f32 %v886, %v918
        %v947 = vadd.f32 %v887, %v919
        %v948 = vlaneseq
        %v949 = vshrl.u32 %v948, 7
        %v950 = vsub.s32 5, %v949
        %v951 = vrot.slane %v416, %v950
        %v952 = vmul.f32 %v569, %v951
        %v953 = vmul.f32 %v661, %v951
        %v954 = vmul.f32 %v572, %v951
        %v955 = vmul.f32 %v662, %v951
        %v956 = vmul.f32 %v575, %v951
        %v957 = vmul.f32 %v663, %v951
        %v958 = vmul.f32 %v578, %v951
        %v959 = vmul.f32 %v664, %v951
        %v960 = vmul.f32 %v581, %v951
        %v961 = vmul.f32 %v665, %v951
        %v962 = vmul.f32 %v584, %v951
        %v963 = vmul.f32 %v666, %v951
        %v964 = vmul.f32 %v587, %v951
        %v965 = vmul.f32 %v667, %v951
        %v966 = vmul.f32 %v590, %v951
        %v967 = vmul.f32 %v668, %v951
        %v968 = vmul.f32 %v593, %v951
        %v969 = vmul.f32 %v669, %v951
        %v970 = vmul.f32 %v596, %v951
        %v971 = vmul.f32 %v670, %v951
        %v972 = vmul.f32 %v599, %v951
        %v973 = vmul.f32 %v671, %v951
        %v974 = vmul.f32 %v602, %v951
        %v975 = vmul.f32 %v672, %v951
        %v976 = vmul.f32 %v605, %v951
        %v977 = vmul.f32 %v673, %v951
        %v978 = vmul.f32 %v608, %v951
        %v979 = vmul.f32 %v674, %v951
        %v980 = vadd.f32 %v920, %v952
        %v981 = vadd.f32 %v921, %v953
        %v982 = vadd.f32 %v922, %v954
        %v983 = vadd.f32 %v923, %v955
        %v984 = vadd.f32 %v924, %v956
        %v985 = vadd.f32 %v925, %v957
        %v986 = vadd.f32 %v926, %v958
        %v987 = vadd.f32 %v927, %v959
        %v988 = vadd.f32 %v928, %v960
        %v989 = vadd.f32 %v929, %v961
        %v990 = vadd.f32 %v930, %v962
        %v991 = vadd.f32 %v931, %v963
        %v992 = vadd.f32 %v932, %v964
        %v993 = vadd.f32 %v933, %v965
        %v994 = vadd.f32 %v934, %v966
        %v995 = vadd.f32 %v935, %v967
        %v996 = vadd.f32 %v936, %v968
        %v997 = vadd.f32 %v937, %v969
        %v998 = vadd.f32 %v938, %v970
        %v999 = vadd.f32 %v939, %v971
        %v1000 = vadd.f32 %v940, %v972
        %v1001 = vadd.f32 %v941, %v973
        %v1002 = vadd.f32 %v942, %v974
        %v1003 = vadd.f32 %v943, %v975
        %v1004 = vadd.f32 %v944, %v976
        %v1005 = vadd.f32 %v945, %v977
        %v1006 = vadd.f32 %v946, %v978
        %v1007 = vadd.f32 %v947, %v979
        %v1008 = vlaneseq
        %v1009 = vshrl.u32 %v1008, 7
        %v1010 = vsub.s32 6, %v1009
        %v1011 = vrot.slane %v416, %v1010
        %v1012 = vmul.f32 %v388, %v1011
        %v1013 = vmul.f32 %v389, %v1011
        %v1014 = vmul.f32 %v390, %v1011
        %v1015 = vmul.f32 %v391, %v1011
        %v1016 = vmul.f32 %v392, %v1011
        %v1017 = vmul.f32 %v393, %v1011
        %v1018 = vmul.f32 %v394, %v1011
        %v1019 = vmul.f32 %v395, %v1011
        %v1020 = vmul.f32 %v396, %v1011
        %v1021 = vmul.f32 %v397, %v1011
        %v1022 = vmul.f32 %v398, %v1011
        %v1023 = vmul.f32 %v399, %v1011
        %v1024 = vmul.f32 %v400, %v1011
        %v1025 = vmul.f32 %v401, %v1011
        %v1026 = vmul.f32 %v402, %v1011
        %v1027 = vmul.f32 %v403, %v1011
        %v1028 = vmul.f32 %v404, %v1011
        %v1029 = vmul.f32 %v405, %v1011
        %v1030 = vmul.f32 %v406, %v1011
        %v1031 = vmul.f32 %v407, %v1011
        %v1032 = vmul.f32 %v408, %v1011
        %v1033 = vmul.f32 %v409, %v1011
        %v1034 = vmul.f32 %v410, %v1011
        %v1035 = vmul.f32 %v411, %v1011
        %v1036 = vmul.f32 %v412, %v1011
        %v1037 = vmul.f32 %v413, %v1011
        %v1038 = vmul.f32 %v414, %v1011
        %v1039 = vmul.f32 %v415, %v1011
        %v1040 = vadd.f32 %v980, %v1012
        %v1041 = vadd.f32 %v981, %v1013
        %v1042 = vadd.f32 %v982, %v1014
        %v1043 = vadd.f32 %v983, %v1015
        %v1044 = vadd.f32 %v984, %v1016
        %v1045 = vadd.f32 %v985, %v1017
        %v1046 = vadd.f32 %v986, %v1018
        %v1047 = vadd.f32 %v987, %v1019
        %v1048 = vadd.f32 %v988, %v1020
        %v1049 = vadd.f32 %v989, %v1021
        %v1050 = vadd.f32 %v990, %v1022
        %v1051 = vadd.f32 %v991, %v1023
        %v1052 = vadd.f32 %v992, %v1024
        %v1053 = vadd.f32 %v993, %v1025
        %v1054 = vadd.f32 %v994, %v1026
        %v1055 = vadd.f32 %v995, %v1027
        %v1056 = vadd.f32 %v996, %v1028
        %v1057 = vadd.f32 %v997, %v1029
        %v1058 = vadd.f32 %v998, %v1030
        %v1059 = vadd.f32 %v999, %v1031
        %v1060 = vadd.f32 %v1000, %v1032
        %v1061 = vadd.f32 %v1001, %v1033
        %v1062 = vadd.f32 %v1002, %v1034
        %v1063 = vadd.f32 %v1003, %v1035
        %v1064 = vadd.f32 %v1004, %v1036
        %v1065 = vadd.f32 %v1005, %v1037
        %v1066 = vadd.f32 %v1006, %v1038
        %v1067 = vadd.f32 %v1007, %v1039
        %v1068 = vlaneseq
        %v1069 = vshrl.u32 %v1068, 7
        %v1070 = vsub.s32 7, %v1069
        %v1071 = vrot.slane %v416, %v1070
        %v1072 = vmul.f32 %v459, %v1071
        %v1073 = vmul.f32 %v549, %v1071
        %v1074 = vmul.f32 %v462, %v1071
        %v1075 = vmul.f32 %v550, %v1071
        %v1076 = vmul.f32 %v465, %v1071
        %v1077 = vmul.f32 %v551, %v1071
        %v1078 = vmul.f32 %v468, %v1071
        %v1079 = vmul.f32 %v552, %v1071
        %v1080 = vmul.f32 %v471, %v1071
        %v1081 = vmul.f32 %v553, %v1071
        %v1082 = vmul.f32 %v474, %v1071
        %v1083 = vmul.f32 %v554, %v1071
        %v1084 = vmul.f32 %v477, %v1071
        %v1085 = vmul.f32 %v555, %v1071
        %v1086 = vmul.f32 %v480, %v1071
        %v1087 = vmul.f32 %v556, %v1071
        %v1088 = vmul.f32 %v483, %v1071
        %v1089 = vmul.f32 %v557, %v1071
        %v1090 = vmul.f32 %v486, %v1071
        %v1091 = vmul.f32 %v558, %v1071
        %v1092 = vmul.f32 %v489, %v1071
        %v1093 = vmul.f32 %v559, %v1071
        %v1094 = vmul.f32 %v492, %v1071
        %v1095 = vmul.f32 %v560, %v1071
        %v1096 = vmul.f32 %v495, %v1071
        %v1097 = vmul.f32 %v561, %v1071
        %v1098 = vmul.f32 %v498, %v1071
        %v1099 = vmul.f32 %v562, %v1071
        %v1100 = vadd.f32 %v1040, %v1072
        %v1101 = vadd.f32 %v1041, %v1073
        %v1102 = vadd.f32 %v1042, %v1074
        %v1103 = vadd.f32 %v1043, %v1075
        %v1104 = vadd.f32 %v1044, %v1076
        %v1105 = vadd.f32 %v1045, %v1077
        %v1106 = vadd.f32 %v1046, %v1078
        %v1107 = vadd.f32 %v1047, %v1079
        %v1108 = vadd.f32 %v1048, %v1080
        %v1109 = vadd.f32 %v1049, %v1081
        %v1110 = vadd.f32 %v1050, %v1082
        %v1111 = vadd.f32 %v1051, %v1083
        %v1112 = vadd.f32 %v1052, %v1084
        %v1113 = vadd.f32 %v1053, %v1085
        %v1114 = vadd.f32 %v1054, %v1086
        %v1115 = vadd.f32 %v1055, %v1087
        %v1116 = vadd.f32 %v1056, %v1088
        %v1117 = vadd.f32 %v1057, %v1089
        %v1118 = vadd.f32 %v1058, %v1090
        %v1119 = vadd.f32 %v1059, %v1091
        %v1120 = vadd.f32 %v1060, %v1092
        %v1121 = vadd.f32 %v1061, %v1093
        %v1122 = vadd.f32 %v1062, %v1094
        %v1123 = vadd.f32 %v1063, %v1095
        %v1124 = vadd.f32 %v1064, %v1096
        %v1125 = vadd.f32 %v1065, %v1097
        %v1126 = vadd.f32 %v1066, %v1098
        %v1127 = vadd.f32 %v1067, %v1099
        %v1128 = vlaneseq
        %v1129 = vshrl.u32 %v1128, 7
        %v1130 = vsub.s32 0, %v1129
        %v1131 = vrot.slane %v417, %v1130
        %v1132 = vmul.f32 %v572, %v1131
        %v1133 = vmul.f32 %v662, %v1131
        %v1134 = vmul.f32 %v575, %v1131
        %v1135 = vmul.f32 %v663, %v1131
        %v1136 = vmul.f32 %v578, %v1131
        %v1137 = vmul.f32 %v664, %v1131
        %v1138 = vmul.f32 %v581, %v1131
        %v1139 = vmul.f32 %v665, %v1131
        %v1140 = vmul.f32 %v584, %v1131
        %v1141 = vmul.f32 %v666, %v1131
        %v1142 = vmul.f32 %v587, %v1131
        %v1143 = vmul.f32 %v667, %v1131
        %v1144 = vmul.f32 %v590, %v1131
        %v1145 = vmul.f32 %v668, %v1131
        %v1146 = vmul.f32 %v593, %v1131
        %v1147 = vmul.f32 %v669, %v1131
        %v1148 = vmul.f32 %v596, %v1131
        %v1149 = vmul.f32 %v670, %v1131
        %v1150 = vmul.f32 %v599, %v1131
        %v1151 = vmul.f32 %v671, %v1131
        %v1152 = vmul.f32 %v602, %v1131
        %v1153 = vmul.f32 %v672, %v1131
        %v1154 = vmul.f32 %v605, %v1131
        %v1155 = vmul.f32 %v673, %v1131
        %v1156 = vmul.f32 %v608, %v1131
        %v1157 = vmul.f32 %v674, %v1131
        %v1158 = vmul.f32 %v611, %v1131
        %v1159 = vmul.f32 %v675, %v1131
        %v1160 = vadd.f32 %v1100, %v1132
        %v1161 = vadd.f32 %v1101, %v1133
        %v1162 = vadd.f32 %v1102, %v1134
        %v1163 = vadd.f32 %v1103, %v1135
        %v1164 = vadd.f32 %v1104, %v1136
        %v1165 = vadd.f32 %v1105, %v1137
        %v1166 = vadd.f32 %v1106, %v1138
        %v1167 = vadd.f32 %v1107, %v1139
        %v1168 = vadd.f32 %v1108, %v1140
        %v1169 = vadd.f32 %v1109, %v1141
        %v1170 = vadd.f32 %v1110, %v1142
        %v1171 = vadd.f32 %v1111, %v1143
        %v1172 = vadd.f32 %v1112, %v1144
        %v1173 = vadd.f32 %v1113, %v1145
        %v1174 = vadd.f32 %v1114, %v1146
        %v1175 = vadd.f32 %v1115, %v1147
        %v1176 = vadd.f32 %v1116, %v1148
        %v1177 = vadd.f32 %v1117, %v1149
        %v1178 = vadd.f32 %v1118, %v1150
        %v1179 = vadd.f32 %v1119, %v1151
        %v1180 = vadd.f32 %v1120, %v1152
        %v1181 = vadd.f32 %v1121, %v1153
        %v1182 = vadd.f32 %v1122, %v1154
        %v1183 = vadd.f32 %v1123, %v1155
        %v1184 = vadd.f32 %v1124, %v1156
        %v1185 = vadd.f32 %v1125, %v1157
        %v1186 = vadd.f32 %v1126, %v1158
        %v1187 = vadd.f32 %v1127, %v1159
        %v1188 = vpack.c.bf16 %v1161, %v1160
        %v1189 = vpack.c.bf16 %v1163, %v1162
        %v1190 = vpack.c.bf16 %v1165, %v1164
        %v1191 = vpack.c.bf16 %v1167, %v1166
        %v1192 = vpack.c.bf16 %v1169, %v1168
        %v1193 = vpack.c.bf16 %v1171, %v1170
        %v1194 = vpack.c.bf16 %v1173, %v1172
        %v1195 = vpack.c.bf16 %v1175, %v1174
        %v1196 = vpack.c.bf16 %v1177, %v1176
        %v1197 = vpack.c.bf16 %v1179, %v1178
        %v1198 = vpack.c.bf16 %v1181, %v1180
        %v1199 = vpack.c.bf16 %v1183, %v1182
        %v1200 = vpack.c.bf16 %v1185, %v1184
        %v1201 = vpack.c.bf16 %v1187, %v1186
        %v1202 = vld [vmem:[#allocation7] sm:$0xf]
        %v1203 = vld [vmem:[#allocation7 + $0x4] sm:$0xf]
        %v1204 = vld [vmem:[#allocation7 + $0x8] sm:$0xf]
        %v1205 = vld [vmem:[#allocation7 + $0xc] sm:$0xf]
        %v1206 = vld [vmem:[#allocation7 + $0x10] sm:$0xf]
        %v1207 = vld [vmem:[#allocation7 + $0x14] sm:$0xf]
        %v1208 = vld [vmem:[#allocation7 + $0x18] sm:$0xf]
        %v1209 = vld [vmem:[#allocation7 + $0x1c] sm:$0xf]
        %v1210 = vld [vmem:[#allocation7 + $0x20] sm:$0xf]
        %v1211 = vld [vmem:[#allocation7 + $0x24] sm:$0xf]
        %v1212 = vld [vmem:[#allocation7 + $0x28] sm:$0xf]
        %v1213 = vld [vmem:[#allocation7 + $0x2c] sm:$0xf]
        %v1214 = vld [vmem:[#allocation7 + $0x30] sm:$0xf]
        %v1215 = vld [vmem:[#allocation7 + $0x34] sm:$0xf]
        %v1216 = vld [vmem:[#allocation7 + $0x38] sm:$0xf]
        %v1217 = vld [vmem:[#allocation7 + $0x3c] sm:$0xf]
        %v1234 = vunpack.c.l.b16 %v1202
        %v1235 = vunpack.c.l.b16 %v1203
        %v1236 = vunpack.c.l.b16 %v1204
        %v1237 = vunpack.c.l.b16 %v1205
        %v1238 = vunpack.c.l.b16 %v1206
        %v1239 = vunpack.c.l.b16 %v1207
        %v1240 = vunpack.c.l.b16 %v1208
        %v1241 = vunpack.c.l.b16 %v1209
        %v1242 = vunpack.c.l.b16 %v1210
        %v1243 = vunpack.c.l.b16 %v1211
        %v1244 = vunpack.c.l.b16 %v1212
        %v1245 = vunpack.c.l.b16 %v1213
        %v1246 = vunpack.c.l.b16 %v1214
        %v1247 = vunpack.c.l.b16 %v1215
        %v1248 = vunpack.c.l.b16 %v1216
        %v1249 = vunpack.c.l.b16 %v1217
        %v1250 = vpack.c.b16 %v1235, %v1234
        %v1251 = vpack.c.b16 %v1237, %v1236
        %v1252 = vpack.c.b16 %v1239, %v1238
        %v1253 = vpack.c.b16 %v1241, %v1240
        %v1254 = vpack.c.b16 %v1243, %v1242
        %v1255 = vpack.c.b16 %v1245, %v1244
        %v1256 = vpack.c.b16 %v1247, %v1246
        %v1257 = vpack.c.b16 %v1249, %v1248
        %1266 = vmatprep.subr.bf16.mxu0 0
        %1267 = vmatpush1.bf16.msra.mxu0 %v1250
        %1268 = vmatprep.subr.bf16.mxu0 0
        %1269 = vmatpush1.bf16.msra.mxu0 %v1251
        %1270 = vmatprep.subr.bf16.mxu0 0
        %1271 = vmatpush1.bf16.msra.mxu0 %v1252
        %1272 = vmatprep.subr.bf16.mxu0 0
        %1273 = vmatpush1.bf16.msra.mxu0 %v1253
        %1274 = vmatprep.subr.bf16.mxu0 0
        %1275 = vmatpush1.bf16.msra.mxu0 %v1254
        %1276 = vmatprep.subr.bf16.mxu0 0
        %1277 = vmatpush1.bf16.msra.mxu0 %v1255
        %1278 = vmatprep.subr.bf16.mxu0 0
        %1279 = vmatpush1.bf16.msra.mxu0 %v1256
        %1280 = vmatprep.subr.bf16.mxu0 0
        %1281 = vmatpush1.bf16.msra.mxu0 %v1257
        %1282 = vmatprep.subr.bf16.mxu0 0
        %1283 = vmatpush1.bf16.msra.mxu0 0
        %1284 = vmatprep.subr.bf16.mxu0 0
        %1285 = vmatpush1.bf16.msra.mxu0 0
        %1286 = vmatprep.subr.bf16.mxu0 0
        %1287 = vmatpush1.bf16.msra.mxu0 0
        %1288 = vmatprep.subr.bf16.mxu0 0
        %1289 = vmatpush1.bf16.msra.mxu0 0
        %1290 = vmatprep.subr.bf16.mxu0 0
        %1291 = vmatpush1.bf16.msra.mxu0 0
        %1292 = vmatprep.subr.bf16.mxu0 0
        %1293 = vmatpush1.bf16.msra.mxu0 0
        %1294 = vmatprep.subr.bf16.mxu0 0
        %1295 = vmatpush1.bf16.msra.mxu0 0
        %1296 = vmatprep.subr.bf16.mxu0 0
        %1297 = vmatpush1.bf16.msra.mxu0 0
        %1298 = vmatprep.mubr.bf16.mxu0 0
        %1299 = vmatmul.mubr.bf16.gmra.mrb[0].mxu0 %v1188
        %v1300 = vpop.f32.mrb[0].mxu0
        %v1301 = vadd.f32 0.0, %v1300
        %v1302 = vpop.f32.mrb[0].mxu0
        %v1303 = vpop.f32.mrb[0].mxu0
        %v1304 = vadd.f32 0.0, %v1303
        %v1305 = vpop.f32.mrb[0].mxu0
        %1306 = vmatprep.mubr.bf16.mxu0 0
        %1307 = vmatmul.mubr.bf16.gmra.mrb[0].mxu0 %v1189
        %v1308 = vpop.f32.mrb[0].mxu0
        %v1309 = vadd.f32 0.0, %v1308
        %v1310 = vpop.f32.mrb[0].mxu0
        %v1311 = vpop.f32.mrb[0].mxu0
        %v1312 = vadd.f32 0.0, %v1311
        %v1313 = vpop.f32.mrb[0].mxu0
        %1314 = vmatprep.mubr.bf16.mxu0 0
        %1315 = vmatmul.mubr.bf16.gmra.mrb[0].mxu0 %v1190
        %v1316 = vpop.f32.mrb[0].mxu0
        %v1317 = vadd.f32 0.0, %v1316
        %v1318 = vpop.f32.mrb[0].mxu0
        %v1319 = vpop.f32.mrb[0].mxu0
        %v1320 = vadd.f32 0.0, %v1319
        %v1321 = vpop.f32.mrb[0].mxu0
        %1322 = vmatprep.mubr.bf16.mxu0 0
        %1323 = vmatmul.mubr.bf16.gmra.mrb[0].mxu0 %v1191
        %v1324 = vpop.f32.mrb[0].mxu0
        %v1325 = vadd.f32 0.0, %v1324
        %v1326 = vpop.f32.mrb[0].mxu0
        %v1327 = vpop.f32.mrb[0].mxu0
        %v1328 = vadd.f32 0.0, %v1327
        %v1329 = vpop.f32.mrb[0].mxu0
        %1330 = vmatprep.mubr.bf16.mxu0 0
        %1331 = vmatmul.mubr.bf16.gmra.mrb[0].mxu0 %v1192
        %v1332 = vpop.f32.mrb[0].mxu0
        %v1333 = vadd.f32 0.0, %v1332
        %v1334 = vpop.f32.mrb[0].mxu0
        %v1335 = vpop.f32.mrb[0].mxu0
        %v1336 = vadd.f32 0.0, %v1335
        %v1337 = vpop.f32.mrb[0].mxu0
        %1338 = vmatprep.mubr.bf16.mxu0 0
        %1339 = vmatmul.mubr.bf16.gmra.mrb[0].mxu0 %v1193
        %v1340 = vpop.f32.mrb[0].mxu0
        %v1341 = vadd.f32 0.0, %v1340
        %v1342 = vpop.f32.mrb[0].mxu0
        %v1343 = vpop.f32.mrb[0].mxu0
        %v1344 = vadd.f32 0.0, %v1343
        %v1345 = vpop.f32.mrb[0].mxu0
        %1346 = vmatprep.mubr.bf16.mxu0 0
        %1347 = vmatmul.mubr.bf16.gmra.mrb[0].mxu0 %v1194
        %v1348 = vpop.f32.mrb[0].mxu0
        %v1349 = vadd.f32 0.0, %v1348
        %v1350 = vpop.f32.mrb[0].mxu0
        %v1351 = vpop.f32.mrb[0].mxu0
        %v1352 = vadd.f32 0.0, %v1351
        %v1353 = vpop.f32.mrb[0].mxu0
        %1354 = vmatprep.mubr.bf16.mxu0 0
        %1355 = vmatmul.mubr.bf16.gmra.mrb[0].mxu0 %v1195
        %v1356 = vpop.f32.mrb[0].mxu0
        %v1357 = vadd.f32 0.0, %v1356
        %v1358 = vpop.f32.mrb[0].mxu0
        %v1359 = vpop.f32.mrb[0].mxu0
        %v1360 = vadd.f32 0.0, %v1359
        %v1361 = vpop.f32.mrb[0].mxu0
        %1362 = vmatprep.mubr.bf16.mxu0 0
        %1363 = vmatmul.mubr.bf16.gmra.mrb[0].mxu0 %v1196
        %v1364 = vpop.f32.mrb[0].mxu0
        %v1365 = vadd.f32 0.0, %v1364
        %v1366 = vpop.f32.mrb[0].mxu0
        %v1367 = vpop.f32.mrb[0].mxu0
        %v1368 = vadd.f32 0.0, %v1367
        %v1369 = vpop.f32.mrb[0].mxu0
        %1370 = vmatprep.mubr.bf16.mxu0 0
        %1371 = vmatmul.mubr.bf16.gmra.mrb[0].mxu0 %v1197
        %v1372 = vpop.f32.mrb[0].mxu0
        %v1373 = vadd.f32 0.0, %v1372
        %v1374 = vpop.f32.mrb[0].mxu0
        %v1375 = vpop.f32.mrb[0].mxu0
        %v1376 = vadd.f32 0.0, %v1375
        %v1377 = vpop.f32.mrb[0].mxu0
        %1378 = vmatprep.mubr.bf16.mxu0 0
        %1379 = vmatmul.mubr.bf16.gmra.mrb[0].mxu0 %v1198
        %v1380 = vpop.f32.mrb[0].mxu0
        %v1381 = vadd.f32 0.0, %v1380
        %v1382 = vpop.f32.mrb[0].mxu0
        %v1383 = vpop.f32.mrb[0].mxu0
        %v1384 = vadd.f32 0.0, %v1383
        %v1385 = vpop.f32.mrb[0].mxu0
        %1386 = vmatprep.mubr.bf16.mxu0 0
        %1387 = vmatmul.mubr.bf16.gmra.mrb[0].mxu0 %v1199
        %v1388 = vpop.f32.mrb[0].mxu0
        %v1389 = vadd.f32 0.0, %v1388
        %v1390 = vpop.f32.mrb[0].mxu0
        %v1391 = vpop.f32.mrb[0].mxu0
        %v1392 = vadd.f32 0.0, %v1391
        %v1393 = vpop.f32.mrb[0].mxu0
        %1394 = vmatprep.mubr.bf16.mxu0 0
        %1395 = vmatmul.mubr.bf16.gmra.mrb[0].mxu0 %v1200
        %v1396 = vpop.f32.mrb[0].mxu0
        %v1397 = vadd.f32 0.0, %v1396
        %v1398 = vpop.f32.mrb[0].mxu0
        %v1399 = vpop.f32.mrb[0].mxu0
        %v1400 = vadd.f32 0.0, %v1399
        %v1401 = vpop.f32.mrb[0].mxu0
        %1402 = vmatprep.mubr.bf16.mxu0 0
        %1403 = vmatmul.mubr.bf16.gmra.mrb[0].mxu0 %v1201
        %v1404 = vpop.f32.mrb[0].mxu0
        %v1405 = vadd.f32 0.0, %v1404
        %v1406 = vpop.f32.mrb[0].mxu0
        %v1407 = vpop.f32.mrb[0].mxu0
        %v1408 = vadd.f32 0.0, %v1407
        %v1409 = vpop.f32.mrb[0].mxu0
        %1410 = vdwg.mxu0
        %v1411 = vpack.c.bf16 %v1304, %v1301
        %v1412 = vpack.c.bf16 %v1312, %v1309
        %v1413 = vpack.c.bf16 %v1320, %v1317
        %v1414 = vpack.c.bf16 %v1328, %v1325
        %v1415 = vpack.c.bf16 %v1336, %v1333
        %v1416 = vpack.c.bf16 %v1344, %v1341
        %v1417 = vpack.c.bf16 %v1352, %v1349
        %v1418 = vpack.c.bf16 %v1360, %v1357
        %v1419 = vpack.c.bf16 %v1368, %v1365
        %v1420 = vpack.c.bf16 %v1376, %v1373
        %v1421 = vpack.c.bf16 %v1384, %v1381
        %v1422 = vpack.c.bf16 %v1392, %v1389
        %v1423 = vpack.c.bf16 %v1400, %v1397
        %v1424 = vpack.c.bf16 %v1408, %v1405
        %v1439 = vunpack.c.l.b16 %v1411
        %v1440 = vunpack.c.h.b16 %v1411
        %v1441 = vunpack.c.l.b16 %v1412
        %v1442 = vunpack.c.h.b16 %v1412
        %v1443 = vunpack.c.l.b16 %v1413
        %v1444 = vunpack.c.h.b16 %v1413
        %v1445 = vunpack.c.l.b16 %v1414
        %v1446 = vunpack.c.h.b16 %v1414
        %v1447 = vunpack.c.l.b16 %v1415
        %v1448 = vunpack.c.h.b16 %v1415
        %v1449 = vunpack.c.l.b16 %v1416
        %v1450 = vunpack.c.h.b16 %v1416
        %v1451 = vunpack.c.l.b16 %v1417
        %v1452 = vunpack.c.h.b16 %v1417
        %v1453 = vunpack.c.l.b16 %v1418
        %v1454 = vunpack.c.h.b16 %v1418
        %v1455 = vunpack.c.l.b16 %v1419
        %v1456 = vunpack.c.h.b16 %v1419
        %v1457 = vunpack.c.l.b16 %v1420
        %v1458 = vunpack.c.h.b16 %v1420
        %v1459 = vunpack.c.l.b16 %v1421
        %v1460 = vunpack.c.h.b16 %v1421
        %v1461 = vunpack.c.l.b16 %v1422
        %v1462 = vunpack.c.h.b16 %v1422
        %v1463 = vunpack.c.l.b16 %v1423
        %v1464 = vunpack.c.h.b16 %v1423
        %v1465 = vunpack.c.l.b16 %v1424
        %v1466 = vunpack.c.h.b16 %v1424
        %v1467 = vpack.c.b16 %v1439, %v1439
        %v1468 = vpack.c.b16 %v1440, %v1440
        %v1469 = vpack.c.b16 %v1441, %v1441
        %v1470 = vpack.c.b16 %v1442, %v1442
        %v1471 = vpack.c.b16 %v1443, %v1443
        %v1472 = vpack.c.b16 %v1444, %v1444
        %v1473 = vpack.c.b16 %v1445, %v1445
        %v1474 = vpack.c.b16 %v1446, %v1446
        %v1475 = vpack.c.b16 %v1447, %v1447
        %v1476 = vpack.c.b16 %v1448, %v1448
        %v1477 = vpack.c.b16 %v1449, %v1449
        %v1478 = vpack.c.b16 %v1450, %v1450
        %v1479 = vpack.c.b16 %v1451, %v1451
        %v1480 = vpack.c.b16 %v1452, %v1452
        %v1481 = vpack.c.b16 %v1453, %v1453
        %v1482 = vpack.c.b16 %v1454, %v1454
        %v1483 = vpack.c.b16 %v1455, %v1455
        %v1484 = vpack.c.b16 %v1456, %v1456
        %v1485 = vpack.c.b16 %v1457, %v1457
        %v1486 = vpack.c.b16 %v1458, %v1458
        %v1487 = vpack.c.b16 %v1459, %v1459
        %v1488 = vpack.c.b16 %v1460, %v1460
        %v1489 = vpack.c.b16 %v1461, %v1461
        %v1490 = vpack.c.b16 %v1462, %v1462
        %v1491 = vpack.c.b16 %v1463, %v1463
        %v1492 = vpack.c.b16 %v1464, %v1464
        %v1493 = vpack.c.b16 %v1465, %v1465
        %v1494 = vpack.c.b16 %v1466, %v1466
        %1523 = vst [vmem:[%s306] sm:$0xf] %v1467
        %1524 = vst [vmem:[%s306 + $0x4] sm:$0xf] %v1468
        %1525 = vst [vmem:[%s306 + $0x8] sm:$0xf] %v1469
        %1526 = vst [vmem:[%s306 + $0xc] sm:$0xf] %v1470
        %1527 = vst [vmem:[%s306 + $0x10] sm:$0xf] %v1471
        %1528 = vst [vmem:[%s306 + $0x14] sm:$0xf] %v1472
        %1529 = vst [vmem:[%s306 + $0x18] sm:$0xf] %v1473
        %1530 = vst [vmem:[%s306 + $0x1c] sm:$0xf] %v1474
        %1531 = vst [vmem:[%s306 + $0x20] sm:$0xf] %v1475
        %1532 = vst [vmem:[%s306 + $0x24] sm:$0xf] %v1476
        %1533 = vst [vmem:[%s306 + $0x28] sm:$0xf] %v1477
        %1534 = vst [vmem:[%s306 + $0x2c] sm:$0xf] %v1478
        %1535 = vst [vmem:[%s306 + $0x30] sm:$0xf] %v1479
        %1536 = vst [vmem:[%s306 + $0x34] sm:$0xf] %v1480
        %1537 = vst [vmem:[%s306 + $0x38] sm:$0xf] %v1481
        %1538 = vst [vmem:[%s306 + $0x3c] sm:$0xf] %v1482
        %1539 = vst [vmem:[%s306 + $0x40] sm:$0xf] %v1483
        %1540 = vst [vmem:[%s306 + $0x44] sm:$0xf] %v1484
        %1541 = vst [vmem:[%s306 + $0x48] sm:$0xf] %v1485
        %1542 = vst [vmem:[%s306 + $0x4c] sm:$0xf] %v1486
        %1543 = vst [vmem:[%s306 + $0x50] sm:$0xf] %v1487
        %1544 = vst [vmem:[%s306 + $0x54] sm:$0xf] %v1488
        %1545 = vst [vmem:[%s306 + $0x58] sm:$0xf] %v1489
        %1546 = vst [vmem:[%s306 + $0x5c] sm:$0xf] %v1490
        %1547 = vst [vmem:[%s306 + $0x60] sm:$0xf] %v1491
        %1548 = vst [vmem:[%s306 + $0x64] sm:$0xf] %v1492
        %1549 = vst [vmem:[%s306 + $0x68] sm:$0xf] %v1493
        %1550 = vst [vmem:[%s306 + $0x6c] sm:$0xf] %v1494
        %v1551 = vlaneseq
        %v1552 = vshrl.u32 %v1551, 7
        %v1553 = vadd.s32 %v1552, 8
        %vm1554 = vcmp.lt.s32.totalorder %v1552, 10
        %vm1555 = vcmp.lt.s32.totalorder %v1553, 10
        %v1556 = vsel %vm1554, 1, 0
        %v1557 = vsel %vm1555, 1, 0
        %v1558 = vcvt.s32.f32 %v1556
        %v1559 = vcvt.s32.f32 %v1557
        %v1560 = vadd.f32 %v1301, %v1309
        %v1561 = vadd.f32 %v1560, %v1317
        %v1562 = vadd.f32 %v1561, %v1325
        %v1563 = vadd.f32 %v1562, %v1333
        %v1564 = vadd.f32 %v1563, %v1341
        %v1565 = vadd.f32 %v1564, %v1349
        %v1566 = vadd.f32 %v1565, %v1357
        %v1567 = vadd.f32 %v1566, %v1365
        %v1568 = vadd.f32 %v1567, %v1373
        %v1569 = vadd.f32 %v1568, %v1381
        %v1570 = vadd.f32 %v1569, %v1389
        %v1571 = vadd.f32 %v1570, %v1397
        %v1572 = vadd.f32 %v1571, %v1405
        %v1573 = vadd.f32 %v1304, %v1312
        %v1574 = vadd.f32 %v1573, %v1320
        %v1575 = vadd.f32 %v1574, %v1328
        %v1576 = vadd.f32 %v1575, %v1336
        %v1577 = vadd.f32 %v1576, %v1344
        %v1578 = vadd.f32 %v1577, %v1352
        %v1579 = vadd.f32 %v1578, %v1360
        %v1580 = vadd.f32 %v1579, %v1368
        %v1581 = vadd.f32 %v1580, %v1376
        %v1582 = vadd.f32 %v1581, %v1384
        %v1583 = vadd.f32 %v1582, %v1392
        %v1584 = vadd.f32 %v1583, %v1400
        %v1585 = vadd.f32 %v1584, %v1408
        %v1586 = vmul.f32 %v1301, %v1301
        %v1587 = vmul.f32 %v1304, %v1304
        %v1588 = vmul.f32 %v1309, %v1309
        %v1589 = vmul.f32 %v1312, %v1312
        %v1590 = vmul.f32 %v1317, %v1317
        %v1591 = vmul.f32 %v1320, %v1320
        %v1592 = vmul.f32 %v1325, %v1325
        %v1593 = vmul.f32 %v1328, %v1328
        %v1594 = vmul.f32 %v1333, %v1333
        %v1595 = vmul.f32 %v1336, %v1336
        %v1596 = vmul.f32 %v1341, %v1341
        %v1597 = vmul.f32 %v1344, %v1344
        %v1598 = vmul.f32 %v1349, %v1349
        %v1599 = vmul.f32 %v1352, %v1352
        %v1600 = vmul.f32 %v1357, %v1357
        %v1601 = vmul.f32 %v1360, %v1360
        %v1602 = vmul.f32 %v1365, %v1365
        %v1603 = vmul.f32 %v1368, %v1368
        %v1604 = vmul.f32 %v1373, %v1373
        %v1605 = vmul.f32 %v1376, %v1376
        %v1606 = vmul.f32 %v1381, %v1381
        %v1607 = vmul.f32 %v1384, %v1384
        %v1608 = vmul.f32 %v1389, %v1389
        %v1609 = vmul.f32 %v1392, %v1392
        %v1610 = vmul.f32 %v1397, %v1397
        %v1611 = vmul.f32 %v1400, %v1400
        %v1612 = vmul.f32 %v1405, %v1405
        %v1613 = vmul.f32 %v1408, %v1408
        %v1614 = vadd.f32 %v1586, %v1588
        %v1615 = vadd.f32 %v1614, %v1590
        %v1616 = vadd.f32 %v1615, %v1592
        %v1617 = vadd.f32 %v1616, %v1594
        %v1618 = vadd.f32 %v1617, %v1596
        %v1619 = vadd.f32 %v1618, %v1598
        %v1620 = vadd.f32 %v1619, %v1600
        %v1621 = vadd.f32 %v1620, %v1602
        %v1622 = vadd.f32 %v1621, %v1604
        %v1623 = vadd.f32 %v1622, %v1606
        %v1624 = vadd.f32 %v1623, %v1608
        %v1625 = vadd.f32 %v1624, %v1610
        %v1626 = vadd.f32 %v1625, %v1612
        %v1627 = vadd.f32 %v1587, %v1589
        %v1628 = vadd.f32 %v1627, %v1591
        %v1629 = vadd.f32 %v1628, %v1593
        %v1630 = vadd.f32 %v1629, %v1595
        %v1631 = vadd.f32 %v1630, %v1597
        %v1632 = vadd.f32 %v1631, %v1599
        %v1633 = vadd.f32 %v1632, %v1601
        %v1634 = vadd.f32 %v1633, %v1603
        %v1635 = vadd.f32 %v1634, %v1605
        %v1636 = vadd.f32 %v1635, %v1607
        %v1637 = vadd.f32 %v1636, %v1609
        %v1638 = vadd.f32 %v1637, %v1611
        %v1639 = vadd.f32 %v1638, %v1613
        %v1640 = vmul.f32 %v1572, %v1558
        %v1641 = vmul.f32 %v1585, %v1559
        %v1642 = vadd.f32 %v1640, %v1641
        %v1643 = vrot.slane %v1642, 4
        %v1644 = vadd.f32 %v1642, %v1643
        %v1645 = vrot.slane %v1644, 2
        %v1646 = vadd.f32 %v1644, %v1645
        %v1647 = vrot.slane %v1646, 1
        %v1648 = vadd.f32 %v1646, %v1647
        %v1649 = vmul.f32 %v1626, %v1558
        %v1650 = vmul.f32 %v1639, %v1559
        %v1651 = vadd.f32 %v1649, %v1650
        %v1652 = vrot.slane %v1651, 4
        %v1653 = vadd.f32 %v1651, %v1652
        %v1654 = vrot.slane %v1653, 2
        %v1655 = vadd.f32 %v1653, %v1654
        %v1656 = vrot.slane %v1655, 1
        %v1657 = vadd.f32 %v1655, %v1656
        %v1658 = vld [vmem:[%s319] sm:$0xf]
        %v1659 = vld [vmem:[%s319 + $0x4] sm:$0xf]
        %v1660 = vld [vmem:[%s319 + $0x8] sm:$0xf]
        %v1661 = vld [vmem:[%s319 + $0xc] sm:$0xf]
        %v1662 = vld [vmem:[%s319 + $0x10] sm:$0xf]
        %v1663 = vld [vmem:[%s319 + $0x14] sm:$0xf]
        %v1664 = vld [vmem:[%s319 + $0x18] sm:$0xf]
        %v1665 = vld [vmem:[%s319 + $0x1c] sm:$0xf]
        %v1666 = vld [vmem:[%s319 + $0x20] sm:$0xf]
        %v1667 = vld [vmem:[%s319 + $0x24] sm:$0xf]
        %v1668 = vld [vmem:[%s319 + $0x28] sm:$0xf]
        %v1669 = vld [vmem:[%s319 + $0x2c] sm:$0xf]
        %v1670 = vld [vmem:[%s319 + $0x30] sm:$0xf]
        %v1671 = vld [vmem:[%s319 + $0x34] sm:$0xf]
        %v1672 = vld [vmem:[%s319 + $0x38] sm:$0xf]
        %v1673 = vld [vmem:[%s319 + $0x3c] sm:$0xf]
        %v1674 = vld [vmem:[%s319 + $0x40] sm:$0xf]
        %v1675 = vld [vmem:[%s319 + $0x44] sm:$0xf]
        %v1676 = vld [vmem:[%s319 + $0x48] sm:$0xf]
        %v1677 = vld [vmem:[%s319 + $0x4c] sm:$0xf]
        %v1678 = vld [vmem:[%s319 + $0x50] sm:$0xf]
        %v1679 = vld [vmem:[%s319 + $0x54] sm:$0xf]
        %v1680 = vld [vmem:[%s319 + $0x58] sm:$0xf]
        %v1681 = vld [vmem:[%s319 + $0x5c] sm:$0xf]
        %v1682 = vld [vmem:[%s319 + $0x60] sm:$0xf]
        %v1683 = vld [vmem:[%s319 + $0x64] sm:$0xf]
        %v1684 = vld [vmem:[%s319 + $0x68] sm:$0xf]
        %v1685 = vld [vmem:[%s319 + $0x6c] sm:$0xf]
        %v1686 = vld [vmem:[#allocation8] sm:$0xf]
        %v1687 = vld [vmem:[#allocation8 + $0x4] sm:$0xf]
        %v1688 = vld [vmem:[#allocation8 + $0x8] sm:$0xf]
        %v1689 = vld [vmem:[#allocation8 + $0xc] sm:$0xf]
        %v1690 = vld [vmem:[#allocation8 + $0x10] sm:$0xf]
        %v1691 = vld [vmem:[#allocation8 + $0x14] sm:$0xf]
        %v1692 = vld [vmem:[#allocation8 + $0x18] sm:$0xf]
        %v1693 = vld [vmem:[#allocation8 + $0x1c] sm:$0xf]
        %v1694 = vld [vmem:[#allocation8 + $0x20] sm:$0xf]
        %v1695 = vld [vmem:[#allocation8 + $0x24] sm:$0xf]
        %v1696 = vld [vmem:[#allocation8 + $0x28] sm:$0xf]
        %v1697 = vld [vmem:[#allocation8 + $0x2c] sm:$0xf]
        %v1698 = vld [vmem:[#allocation8 + $0x30] sm:$0xf]
        %v1699 = vld [vmem:[#allocation8 + $0x34] sm:$0xf]
        %v1700 = vld [vmem:[#allocation8 + $0x38] sm:$0xf]
        %v1701 = vld [vmem:[#allocation8 + $0x3c] sm:$0xf]
        %v1730 = vunpack.c.l.b16 %v1658
        %v1731 = vunpack.c.l.b16 %v1659
        %v1732 = vunpack.c.l.b16 %v1660
        %v1733 = vunpack.c.l.b16 %v1661
        %v1734 = vunpack.c.l.b16 %v1662
        %v1735 = vunpack.c.l.b16 %v1663
        %v1736 = vunpack.c.l.b16 %v1664
        %v1737 = vunpack.c.l.b16 %v1665
        %v1738 = vunpack.c.l.b16 %v1666
        %v1739 = vunpack.c.l.b16 %v1667
        %v1740 = vunpack.c.l.b16 %v1668
        %v1741 = vunpack.c.l.b16 %v1669
        %v1742 = vunpack.c.l.b16 %v1670
        %v1743 = vunpack.c.l.b16 %v1671
        %v1744 = vunpack.c.l.b16 %v1672
        %v1745 = vunpack.c.l.b16 %v1673
        %v1746 = vunpack.c.l.b16 %v1674
        %v1747 = vunpack.c.l.b16 %v1675
        %v1748 = vunpack.c.l.b16 %v1676
        %v1749 = vunpack.c.l.b16 %v1677
        %v1750 = vunpack.c.l.b16 %v1678
        %v1751 = vunpack.c.l.b16 %v1679
        %v1752 = vunpack.c.l.b16 %v1680
        %v1753 = vunpack.c.l.b16 %v1681
        %v1754 = vunpack.c.l.b16 %v1682
        %v1755 = vunpack.c.l.b16 %v1683
        %v1756 = vunpack.c.l.b16 %v1684
        %v1757 = vunpack.c.l.b16 %v1685
        %v1758 = vpack.c.b16 %v1731, %v1730
        %v1759 = vpack.c.b16 %v1733, %v1732
        %v1760 = vpack.c.b16 %v1735, %v1734
        %v1761 = vpack.c.b16 %v1737, %v1736
        %v1762 = vpack.c.b16 %v1739, %v1738
        %v1763 = vpack.c.b16 %v1741, %v1740
        %v1764 = vpack.c.b16 %v1743, %v1742
        %v1765 = vpack.c.b16 %v1745, %v1744
        %v1766 = vpack.c.b16 %v1747, %v1746
        %v1767 = vpack.c.b16 %v1749, %v1748
        %v1768 = vpack.c.b16 %v1751, %v1750
        %v1769 = vpack.c.b16 %v1753, %v1752
        %v1770 = vpack.c.b16 %v1755, %v1754
        %v1771 = vpack.c.b16 %v1757, %v1756
        %v1802 = vunpack.c.l.b16 %v1686
        %v1803 = vunpack.c.l.b16 %v1687
        %v1804 = vunpack.c.l.b16 %v1688
        %v1805 = vunpack.c.l.b16 %v1689
        %v1806 = vunpack.c.l.b16 %v1690
        %v1807 = vunpack.c.l.b16 %v1691
        %v1808 = vunpack.c.l.b16 %v1692
        %v1809 = vunpack.c.l.b16 %v1693
        %v1810 = vunpack.c.l.b16 %v1694
        %v1811 = vunpack.c.l.b16 %v1695
        %v1812 = vunpack.c.l.b16 %v1696
        %v1813 = vunpack.c.l.b16 %v1697
        %v1814 = vunpack.c.l.b16 %v1698
        %v1815 = vunpack.c.l.b16 %v1699
        %v1816 = vunpack.c.l.b16 %v1700
        %v1817 = vunpack.c.l.b16 %v1701
        %v1818 = vpack.c.b16 %v1803, %v1802
        %v1819 = vpack.c.b16 %v1805, %v1804
        %v1820 = vpack.c.b16 %v1807, %v1806
        %v1821 = vpack.c.b16 %v1809, %v1808
        %v1822 = vpack.c.b16 %v1811, %v1810
        %v1823 = vpack.c.b16 %v1813, %v1812
        %v1824 = vpack.c.b16 %v1815, %v1814
        %v1825 = vpack.c.b16 %v1817, %v1816
        %1834 = vmatprep.subr.bf16.mxu0 0
        %1835 = vmatpush1.bf16.msra.mxu0 %v1818
        %1836 = vmatprep.subr.bf16.mxu0 0
        %1837 = vmatpush1.bf16.msra.mxu0 %v1819
        %1838 = vmatprep.subr.bf16.mxu0 0
        %1839 = vmatpush1.bf16.msra.mxu0 %v1820
        %1840 = vmatprep.subr.bf16.mxu0 0
        %1841 = vmatpush1.bf16.msra.mxu0 %v1821
        %1842 = vmatprep.subr.bf16.mxu0 0
        %1843 = vmatpush1.bf16.msra.mxu0 %v1822
        %1844 = vmatprep.subr.bf16.mxu0 0
        %1845 = vmatpush1.bf16.msra.mxu0 %v1823
        %1846 = vmatprep.subr.bf16.mxu0 0
        %1847 = vmatpush1.bf16.msra.mxu0 %v1824
        %1848 = vmatprep.subr.bf16.mxu0 0
        %1849 = vmatpush1.bf16.msra.mxu0 %v1825
        %1850 = vmatprep.subr.bf16.mxu0 0
        %1851 = vmatpush1.bf16.msra.mxu0 0
        %1852 = vmatprep.subr.bf16.mxu0 0
        %1853 = vmatpush1.bf16.msra.mxu0 0
        %1854 = vmatprep.subr.bf16.mxu0 0
        %1855 = vmatpush1.bf16.msra.mxu0 0
        %1856 = vmatprep.subr.bf16.mxu0 0
        %1857 = vmatpush1.bf16.msra.mxu0 0
        %1858 = vmatprep.subr.bf16.mxu0 0
        %1859 = vmatpush1.bf16.msra.mxu0 0
        %1860 = vmatprep.subr.bf16.mxu0 0
        %1861 = vmatpush1.bf16.msra.mxu0 0
        %1862 = vmatprep.subr.bf16.mxu0 0
        %1863 = vmatpush1.bf16.msra.mxu0 0
        %1864 = vmatprep.subr.bf16.mxu0 0
        %1865 = vmatpush1.bf16.msra.mxu0 0
        %1866 = vmatprep.mubr.bf16.mxu0 0
        %1867 = vmatmul.mubr.bf16.gmra.mrb[0].mxu0 %v1758
        %v1868 = vpop.f32.mrb[0].mxu0
        %v1869 = vadd.f32 0.0, %v1868
        %v1870 = vpop.f32.mrb[0].mxu0
        %v1871 = vpop.f32.mrb[0].mxu0
        %v1872 = vadd.f32 0.0, %v1871
        %v1873 = vpop.f32.mrb[0].mxu0
        %1874 = vmatprep.mubr.bf16.mxu0 0
        %1875 = vmatmul.mubr.bf16.gmra.mrb[0].mxu0 %v1759
        %v1876 = vpop.f32.mrb[0].mxu0
        %v1877 = vadd.f32 0.0, %v1876
        %v1878 = vpop.f32.mrb[0].mxu0
        %v1879 = vpop.f32.mrb[0].mxu0
        %v1880 = vadd.f32 0.0, %v1879
        %v1881 = vpop.f32.mrb[0].mxu0
        %1882 = vmatprep.mubr.bf16.mxu0 0
        %1883 = vmatmul.mubr.bf16.gmra.mrb[0].mxu0 %v1760
        %v1884 = vpop.f32.mrb[0].mxu0
        %v1885 = vadd.f32 0.0, %v1884
        %v1886 = vpop.f32.mrb[0].mxu0
        %v1887 = vpop.f32.mrb[0].mxu0
        %v1888 = vadd.f32 0.0, %v1887
        %v1889 = vpop.f32.mrb[0].mxu0
        %1890 = vmatprep.mubr.bf16.mxu0 0
        %1891 = vmatmul.mubr.bf16.gmra.mrb[0].mxu0 %v1761
        %v1892 = vpop.f32.mrb[0].mxu0
        %v1893 = vadd.f32 0.0, %v1892
        %v1894 = vpop.f32.mrb[0].mxu0
        %v1895 = vpop.f32.mrb[0].mxu0
        %v1896 = vadd.f32 0.0, %v1895
        %v1897 = vpop.f32.mrb[0].mxu0
        %1898 = vmatprep.mubr.bf16.mxu0 0
        %1899 = vmatmul.mubr.bf16.gmra.mrb[0].mxu0 %v1762
        %v1900 = vpop.f32.mrb[0].mxu0
        %v1901 = vadd.f32 0.0, %v1900
        %v1902 = vpop.f32.mrb[0].mxu0
        %v1903 = vpop.f32.mrb[0].mxu0
        %v1904 = vadd.f32 0.0, %v1903
        %v1905 = vpop.f32.mrb[0].mxu0
        %1906 = vmatprep.mubr.bf16.mxu0 0
        %1907 = vmatmul.mubr.bf16.gmra.mrb[0].mxu0 %v1763
        %v1908 = vpop.f32.mrb[0].mxu0
        %v1909 = vadd.f32 0.0, %v1908
        %v1910 = vpop.f32.mrb[0].mxu0
        %v1911 = vpop.f32.mrb[0].mxu0
        %v1912 = vadd.f32 0.0, %v1911
        %v1913 = vpop.f32.mrb[0].mxu0
        %1914 = vmatprep.mubr.bf16.mxu0 0
        %1915 = vmatmul.mubr.bf16.gmra.mrb[0].mxu0 %v1764
        %v1916 = vpop.f32.mrb[0].mxu0
        %v1917 = vadd.f32 0.0, %v1916
        %v1918 = vpop.f32.mrb[0].mxu0
        %v1919 = vpop.f32.mrb[0].mxu0
        %v1920 = vadd.f32 0.0, %v1919
        %v1921 = vpop.f32.mrb[0].mxu0
        %1922 = vmatprep.mubr.bf16.mxu0 0
        %1923 = vmatmul.mubr.bf16.gmra.mrb[0].mxu0 %v1765
        %v1924 = vpop.f32.mrb[0].mxu0
        %v1925 = vadd.f32 0.0, %v1924
        %v1926 = vpop.f32.mrb[0].mxu0
        %v1927 = vpop.f32.mrb[0].mxu0
        %v1928 = vadd.f32 0.0, %v1927
        %v1929 = vpop.f32.mrb[0].mxu0
        %1930 = vmatprep.mubr.bf16.mxu0 0
        %1931 = vmatmul.mubr.bf16.gmra.mrb[0].mxu0 %v1766
        %v1932 = vpop.f32.mrb[0].mxu0
        %v1933 = vadd.f32 0.0, %v1932
        %v1934 = vpop.f32.mrb[0].mxu0
        %v1935 = vpop.f32.mrb[0].mxu0
        %v1936 = vadd.f32 0.0, %v1935
        %v1937 = vpop.f32.mrb[0].mxu0
        %1938 = vmatprep.mubr.bf16.mxu0 0
        %1939 = vmatmul.mubr.bf16.gmra.mrb[0].mxu0 %v1767
        %v1940 = vpop.f32.mrb[0].mxu0
        %v1941 = vadd.f32 0.0, %v1940
        %v1942 = vpop.f32.mrb[0].mxu0
        %v1943 = vpop.f32.mrb[0].mxu0
        %v1944 = vadd.f32 0.0, %v1943
        %v1945 = vpop.f32.mrb[0].mxu0
        %1946 = vmatprep.mubr.bf16.mxu0 0
        %1947 = vmatmul.mubr.bf16.gmra.mrb[0].mxu0 %v1768
        %v1948 = vpop.f32.mrb[0].mxu0
        %v1949 = vadd.f32 0.0, %v1948
        %v1950 = vpop.f32.mrb[0].mxu0
        %v1951 = vpop.f32.mrb[0].mxu0
        %v1952 = vadd.f32 0.0, %v1951
        %v1953 = vpop.f32.mrb[0].mxu0
        %1954 = vmatprep.mubr.bf16.mxu0 0
        %1955 = vmatmul.mubr.bf16.gmra.mrb[0].mxu0 %v1769
        %v1956 = vpop.f32.mrb[0].mxu0
        %v1957 = vadd.f32 0.0, %v1956
        %v1958 = vpop.f32.mrb[0].mxu0
        %v1959 = vpop.f32.mrb[0].mxu0
        %v1960 = vadd.f32 0.0, %v1959
        %v1961 = vpop.f32.mrb[0].mxu0
        %1962 = vmatprep.mubr.bf16.mxu0 0
        %1963 = vmatmul.mubr.bf16.gmra.mrb[0].mxu0 %v1770
        %v1964 = vpop.f32.mrb[0].mxu0
        %v1965 = vadd.f32 0.0, %v1964
        %v1966 = vpop.f32.mrb[0].mxu0
        %v1967 = vpop.f32.mrb[0].mxu0
        %v1968 = vadd.f32 0.0, %v1967
        %v1969 = vpop.f32.mrb[0].mxu0
        %1970 = vmatprep.mubr.bf16.mxu0 0
        %1971 = vmatmul.mubr.bf16.gmra.mrb[0].mxu0 %v1771
        %v1972 = vpop.f32.mrb[0].mxu0
        %v1973 = vadd.f32 0.0, %v1972
        %v1974 = vpop.f32.mrb[0].mxu0
        %v1975 = vpop.f32.mrb[0].mxu0
        %v1976 = vadd.f32 0.0, %v1975
        %v1977 = vpop.f32.mrb[0].mxu0
        %1978 = vdwg.mxu0
        %v1979 = vadd.f32 %v1869, %v1872
        %v1980 = vadd.f32 %v1979, %v1877
        %v1981 = vadd.f32 %v1980, %v1880
        %v1982 = vadd.f32 %v1981, %v1885
        %v1983 = vadd.f32 %v1982, %v1888
        %v1984 = vadd.f32 %v1983, %v1893
        %v1985 = vadd.f32 %v1984, %v1896
        %v1986 = vadd.f32 %v1985, %v1901
        %v1987 = vadd.f32 %v1986, %v1904
        %v1988 = vadd.f32 %v1987, %v1909
        %v1989 = vadd.f32 %v1988, %v1912
        %v1990 = vadd.f32 %v1989, %v1917
        %v1991 = vadd.f32 %v1990, %v1920
        %v1992 = vadd.f32 %v1991, %v1925
        %v1993 = vadd.f32 %v1992, %v1928
        %v1994 = vadd.f32 %v1993, %v1933
        %v1995 = vadd.f32 %v1994, %v1936
        %v1996 = vadd.f32 %v1995, %v1941
        %v1997 = vadd.f32 %v1996, %v1944
        %v1998 = vadd.f32 %v1997, %v1949
        %v1999 = vadd.f32 %v1998, %v1952
        %v2000 = vadd.f32 %v1999, %v1957
        %v2001 = vadd.f32 %v2000, %v1960
        %v2002 = vadd.f32 %v2001, %v1965
        %v2003 = vadd.f32 %v2002, %v1968
        %v2004 = vadd.f32 %v2003, %v1973
        %v2005 = vadd.f32 %v2004, %v1976
        %v2006 = vrot.slane %v2005, 4
        %v2007 = vadd.f32 %v2005, %v2006
        %v2008 = vrot.slane %v2007, 2
        %v2009 = vadd.f32 %v2007, %v2008
        %v2010 = vrot.slane %v2009, 1
        %v2011 = vadd.f32 %v2009, %v2010
        %v2012 = vmul.f32 %v1869, %v1869
        %v2013 = vmul.f32 %v1872, %v1872
        %v2014 = vmul.f32 %v1877, %v1877
        %v2015 = vmul.f32 %v1880, %v1880
        %v2016 = vmul.f32 %v1885, %v1885
        %v2017 = vmul.f32 %v1888, %v1888
        %v2018 = vmul.f32 %v1893, %v1893
        %v2019 = vmul.f32 %v1896, %v1896
        %v2020 = vmul.f32 %v1901, %v1901
        %v2021 = vmul.f32 %v1904, %v1904
        %v2022 = vmul.f32 %v1909, %v1909
        %v2023 = vmul.f32 %v1912, %v1912
        %v2024 = vmul.f32 %v1917, %v1917
        %v2025 = vmul.f32 %v1920, %v1920
        %v2026 = vmul.f32 %v1925, %v1925
        %v2027 = vmul.f32 %v1928, %v1928
        %v2028 = vmul.f32 %v1933, %v1933
        %v2029 = vmul.f32 %v1936, %v1936
        %v2030 = vmul.f32 %v1941, %v1941
        %v2031 = vmul.f32 %v1944, %v1944
        %v2032 = vmul.f32 %v1949, %v1949
        %v2033 = vmul.f32 %v1952, %v1952
        %v2034 = vmul.f32 %v1957, %v1957
        %v2035 = vmul.f32 %v1960, %v1960
        %v2036 = vmul.f32 %v1965, %v1965
        %v2037 = vmul.f32 %v1968, %v1968
        %v2038 = vmul.f32 %v1973, %v1973
        %v2039 = vmul.f32 %v1976, %v1976
        %v2040 = vadd.f32 %v2012, %v2013
        %v2041 = vadd.f32 %v2040, %v2014
        %v2042 = vadd.f32 %v2041, %v2015
        %v2043 = vadd.f32 %v2042, %v2016
        %v2044 = vadd.f32 %v2043, %v2017
        %v2045 = vadd.f32 %v2044, %v2018
        %v2046 = vadd.f32 %v2045, %v2019
        %v2047 = vadd.f32 %v2046, %v2020
        %v2048 = vadd.f32 %v2047, %v2021
        %v2049 = vadd.f32 %v2048, %v2022
        %v2050 = vadd.f32 %v2049, %v2023
        %v2051 = vadd.f32 %v2050, %v2024
        %v2052 = vadd.f32 %v2051, %v2025
        %v2053 = vadd.f32 %v2052, %v2026
        %v2054 = vadd.f32 %v2053, %v2027
        %v2055 = vadd.f32 %v2054, %v2028
        %v2056 = vadd.f32 %v2055, %v2029
        %v2057 = vadd.f32 %v2056, %v2030
        %v2058 = vadd.f32 %v2057, %v2031
        %v2059 = vadd.f32 %v2058, %v2032
        %v2060 = vadd.f32 %v2059, %v2033
        %v2061 = vadd.f32 %v2060, %v2034
        %v2062 = vadd.f32 %v2061, %v2035
        %v2063 = vadd.f32 %v2062, %v2036
        %v2064 = vadd.f32 %v2063, %v2037
        %v2065 = vadd.f32 %v2064, %v2038
        %v2066 = vadd.f32 %v2065, %v2039
        %v2067 = vrot.slane %v2066, 4
        %v2068 = vadd.f32 %v2066, %v2067
        %v2069 = vrot.slane %v2068, 2
        %v2070 = vadd.f32 %v2068, %v2069
        %v2071 = vrot.slane %v2070, 1
        %v2072 = vadd.f32 %v2070, %v2071
        %vm2073 = vcmask 1040384
        %v2074 = vsel %vm2073, %v1648, %v1657
        %vm2075 = vcmask 1041408
        %v2076 = vsel %vm2075, %v2074, %v2011
        %vm2077 = vcmask 1042432
        %v2078 = vsel %vm2077, %v2076, %v2072
        %2079 = vst [vmem:[%s313] sm:$0xf] %v2078
        %p2080 = scmp.eq.s32.totalorder %s33, 0
        // Predicated region
        $region53: #{tpu_custom_call.1} parent=35 // pred_check
          %p2081 = pneg %p2080
        $region54: #{tpu_custom_call.1} parent=35 // pred_check_branch
          %2083 = sbr.rel (%p2081) target = $region56
        $region55: #{tpu_custom_call.1} parent=35 // pred_region
          %s2084 = sadd.s32 %s316, 14
          %s2085 = smul.u32 %s2084, 2
          %s2086 = smul.addr %s2085, 4
          %s2087 = scalar_lea.vmem %s270, %s2086 [#allocation2]
          %v2088 = vld [vmem:[%s2087] sm:$0xf]
          %v2089 = vld [vmem:[%s2087 + $0x4] sm:$0xf]
          %v2090 = vld [vmem:[%s2087 + $0x8] sm:$0xf]
          %v2091 = vld [vmem:[%s2087 + $0xc] sm:$0xf]
          %v2092 = vld [vmem:[#allocation8] sm:$0xf]
          %v2093 = vld [vmem:[#allocation8 + $0x4] sm:$0xf]
          %v2094 = vld [vmem:[#allocation8 + $0x8] sm:$0xf]
          %v2095 = vld [vmem:[#allocation8 + $0xc] sm:$0xf]
          %v2096 = vld [vmem:[#allocation8 + $0x10] sm:$0xf]
          %v2097 = vld [vmem:[#allocation8 + $0x14] sm:$0xf]
          %v2098 = vld [vmem:[#allocation8 + $0x18] sm:$0xf]
          %v2099 = vld [vmem:[#allocation8 + $0x1c] sm:$0xf]
          %v2100 = vld [vmem:[#allocation8 + $0x20] sm:$0xf]
          %v2101 = vld [vmem:[#allocation8 + $0x24] sm:$0xf]
          %v2102 = vld [vmem:[#allocation8 + $0x28] sm:$0xf]
          %v2103 = vld [vmem:[#allocation8 + $0x2c] sm:$0xf]
          %v2104 = vld [vmem:[#allocation8 + $0x30] sm:$0xf]
          %v2105 = vld [vmem:[#allocation8 + $0x34] sm:$0xf]
          %v2106 = vld [vmem:[#allocation8 + $0x38] sm:$0xf]
          %v2107 = vld [vmem:[#allocation8 + $0x3c] sm:$0xf]
          %v2112 = vunpack.c.l.b16 %v2088
          %v2113 = vunpack.c.l.b16 %v2089
          %v2114 = vunpack.c.l.b16 %v2090
          %v2115 = vunpack.c.l.b16 %v2091
          %v2116 = vpack.c.b16 %v2113, %v2112
          %v2117 = vpack.c.b16 %v2115, %v2114
          %v2136 = vunpack.c.l.b16 %v2092
          %v2137 = vunpack.c.l.b16 %v2093
          %v2138 = vunpack.c.l.b16 %v2094
          %v2139 = vunpack.c.l.b16 %v2095
          %v2140 = vunpack.c.l.b16 %v2096
          %v2141 = vunpack.c.l.b16 %v2097
          %v2142 = vunpack.c.l.b16 %v2098
          %v2143 = vunpack.c.l.b16 %v2099
          %v2144 = vunpack.c.l.b16 %v2100
          %v2145 = vunpack.c.l.b16 %v2101
          %v2146 = vunpack.c.l.b16 %v2102
          %v2147 = vunpack.c.l.b16 %v2103
          %v2148 = vunpack.c.l.b16 %v2104
          %v2149 = vunpack.c.l.b16 %v2105
          %v2150 = vunpack.c.l.b16 %v2106
          %v2151 = vunpack.c.l.b16 %v2107
          %v2152 = vpack.c.b16 %v2137, %v2136
          %v2153 = vpack.c.b16 %v2139, %v2138
          %v2154 = vpack.c.b16 %v2141, %v2140
          %v2155 = vpack.c.b16 %v2143, %v2142
          %v2156 = vpack.c.b16 %v2145, %v2144
          %v2157 = vpack.c.b16 %v2147, %v2146
          %v2158 = vpack.c.b16 %v2149, %v2148
          %v2159 = vpack.c.b16 %v2151, %v2150
          %2168 = vmatprep.subr.bf16.mxu0 0
          %2169 = vmatpush1.bf16.msra.mxu0 %v2152
          %2170 = vmatprep.subr.bf16.mxu0 0
          %2171 = vmatpush1.bf16.msra.mxu0 %v2153
          %2172 = vmatprep.subr.bf16.mxu0 0
          %2173 = vmatpush1.bf16.msra.mxu0 %v2154
          %2174 = vmatprep.subr.bf16.mxu0 0
          %2175 = vmatpush1.bf16.msra.mxu0 %v2155
          %2176 = vmatprep.subr.bf16.mxu0 0
          %2177 = vmatpush1.bf16.msra.mxu0 %v2156
          %2178 = vmatprep.subr.bf16.mxu0 0
          %2179 = vmatpush1.bf16.msra.mxu0 %v2157
          %2180 = vmatprep.subr.bf16.mxu0 0
          %2181 = vmatpush1.bf16.msra.mxu0 %v2158
          %2182 = vmatprep.subr.bf16.mxu0 0
          %2183 = vmatpush1.bf16.msra.mxu0 %v2159
          %2184 = vmatprep.subr.bf16.mxu0 0
          %2185 = vmatpush1.bf16.msra.mxu0 0
          %2186 = vmatprep.subr.bf16.mxu0 0
          %2187 = vmatpush1.bf16.msra.mxu0 0
          %2188 = vmatprep.subr.bf16.mxu0 0
          %2189 = vmatpush1.bf16.msra.mxu0 0
          %2190 = vmatprep.subr.bf16.mxu0 0
          %2191 = vmatpush1.bf16.msra.mxu0 0
          %2192 = vmatprep.subr.bf16.mxu0 0
          %2193 = vmatpush1.bf16.msra.mxu0 0
          %2194 = vmatprep.subr.bf16.mxu0 0
          %2195 = vmatpush1.bf16.msra.mxu0 0
          %2196 = vmatprep.subr.bf16.mxu0 0
          %2197 = vmatpush1.bf16.msra.mxu0 0
          %2198 = vmatprep.subr.bf16.mxu0 0
          %2199 = vmatpush1.bf16.msra.mxu0 0
          %2200 = vmatprep.mubr.bf16.mxu0 0
          %2201 = vmatmul.mubr.bf16.gmra.mrb[0].mxu0 %v2116
          %v2202 = vpop.f32.mrb[0].mxu0
          %v2203 = vadd.f32 0.0, %v2202
          %v2204 = vpop.f32.mrb[0].mxu0
          %v2205 = vpop.f32.mrb[0].mxu0
          %v2206 = vadd.f32 0.0, %v2205
          %v2207 = vpop.f32.mrb[0].mxu0
          %2208 = vmatprep.mubr.bf16.mxu0 0
          %2209 = vmatmul.mubr.bf16.gmra.mrb[0].mxu0 %v2117
          %v2210 = vpop.f32.mrb[0].mxu0
          %v2211 = vadd.f32 0.0, %v2210
          %v2212 = vpop.f32.mrb[0].mxu0
          %v2213 = vpop.f32.mrb[0].mxu0
          %v2214 = vadd.f32 0.0, %v2213
          %v2215 = vpop.f32.mrb[0].mxu0
          %2216 = vdwg.mxu0
          %v2217 = vadd.f32 %v2203, %v2206
          %v2218 = vadd.f32 %v2217, %v2211
          %v2219 = vadd.f32 %v2218, %v2214
          %v2220 = vrot.slane %v2219, 4
          %v2221 = vadd.f32 %v2219, %v2220
          %v2222 = vrot.slane %v2221, 2
          %v2223 = vadd.f32 %v2221, %v2222
          %v2224 = vrot.slane %v2223, 1
          %v2225 = vadd.f32 %v2223, %v2224
          %v2226 = vmul.f32 %v2203, %v2203
          %v2227 = vmul.f32 %v2206, %v2206
          %v2228 = vmul.f32 %v2211, %v2211
          %v2229 = vmul.f32 %v2214, %v2214
          %v2230 = vadd.f32 %v2226, %v2227
          %v2231 = vadd.f32 %v2230, %v2228
          %v2232 = vadd.f32 %v2231, %v2229
          %v2233 = vrot.slane %v2232, 4
          %v2234 = vadd.f32 %v2232, %v2233
          %v2235 = vrot.slane %v2234, 2
          %v2236 = vadd.f32 %v2234, %v2235
          %v2237 = vrot.slane %v2236, 1
          %v2238 = vadd.f32 %v2236, %v2237
          %v2239 = vld [vmem:[%s313] sm:$0xf]
          %v2240 = vsel %vm2075, 0.0, %v2225
          %v2241 = vsel %vm2077, %v2240, %v2238
          %v2242 = vadd.f32 %v2239, %v2241
          %2243 = vst [vmem:[%s313] sm:$0xf] %v2242
        $region56: #{tpu_custom_call.1} parent=35 // pred_fallthru
          _
        %s2244 = sand.u32 %s139, 1
        %s2245 = scalar_lea.sflag [#allocation4], %s2244
        %s2246 = sand.u32 %s139, 1
        %s2247 = smul.addr %s2246, 112
        %s2248 = scalar_lea.vmem [#allocation10], %s2247
        %s2249 = sand.u32 %s167, 1
        %s2250 = scalar_lea.sflag [#allocation12], %s2249
        %s2251 = sand.u32 %s167, 1
        %s2252 = smul.addr %s2251, 4
        %s2253 = scalar_lea.vmem [#allocation11], %s2252
        // Predicated region
        $region57: #{tpu_custom_call.1} parent=35 // pred_check
          %p2254 = pneg %p149
        $region58: #{tpu_custom_call.1} parent=35 // pred_check_branch
          %2256 = sbr.rel (%p2254) target = $region60
        $region59: #{tpu_custom_call.1} parent=35 // pred_region
          %s2257 = smul.u32 14, %s33
          %s2259 = ssub.s32 1792, 1792
          %2260 = vsyncadd %s2245, %s2259
          %s2261 = smul.addr %s2257, 2
          %s2262 = smul.addr %s32, 28
          %s2263 = sadd.s32 %s2261, %s2262
          %s2264 = smul.addr %s2263, 64
          %s2265 = scalar_lea.hbm %s4, %s2264
          %s2266 = sshll.u32 %s2248, 4
          %s2267 = int_to_ptr.vmem [resolvable:$true] %s2266
          %2272 = dma.vmem_to_hbm [thread:$0]  %s2267, 1792, %s2265, %s2245, 64, 64, 4
        $region60: #{tpu_custom_call.1} parent=35 // pred_fallthru
          _
        // Predicated region
        $region61: #{tpu_custom_call.1} parent=35 // pred_check
          %p2273 = pneg %p177
        $region62: #{tpu_custom_call.1} parent=35 // pred_check_branch
          %2275 = sbr.rel (%p2273) target = $region64
        $region63: #{tpu_custom_call.1} parent=35 // pred_region
          %s2277 = ssub.s32 64, 64
          %2278 = vsyncadd %s2250, %s2277
          %s2279 = sadd.s32 %s33, %s32
          %s2280 = smul.addr %s2279, 64
          %s2281 = scalar_lea.hbm %s5, %s2280
          %s2283 = sshll.u32 %s2253, 4
          %s2284 = int_to_ptr.vmem [resolvable:$true] %s2283
          %2286 = dma.vmem_to_hbm [thread:$0]  %s2284, 64, %s2281, %s2250
        $region64: #{tpu_custom_call.1} parent=35 // pred_fallthru
          _
      $region36: #{tpu_custom_call.1} parent=5 // pred_fallthru
        _
      %p2287 = scmp.le.s32.totalorder 2, %s23
      // Predicated region
      $region65: #{tpu_custom_call.1} parent=5 // pred_check
        %p2288 = pneg %p2287
      $region66: #{tpu_custom_call.1} parent=5 // pred_check_branch
        %2290 = sbr.rel (%p2288) target = $region68
      $region67: #{tpu_custom_call.1} parent=5 // pred_region
        %s2291 = ssub.s32 %s23, 2
        // Predicated region
        $region69: #{tpu_custom_call.1} parent=67 // pred_check
          %p2292 = pneg %p155
        $region70: #{tpu_custom_call.1} parent=67 // pred_check_branch
          %2294 = sbr.rel (%p2292) target = $region72
        $region71: #{tpu_custom_call.1} parent=67 // pred_region
          %s2295 = sand.u32 %s140, 1
          %s2296 = scalar_lea.sflag [#allocation4], %s2295
          %s2297 = sand.u32 %s140, 1
          %s2298 = smul.addr %s2297, 112
          %s2299 = scalar_lea.vmem [#allocation10], %s2298
          %2300 = dma.done %s2296, 1792
        $region72: #{tpu_custom_call.1} parent=67 // pred_fallthru
          _
        // Predicated region
        $region73: #{tpu_custom_call.1} parent=67 // pred_check
          %p2301 = pneg %p183
        $region74: #{tpu_custom_call.1} parent=67 // pred_check_branch
          %2303 = sbr.rel (%p2301) target = $region76
        $region75: #{tpu_custom_call.1} parent=67 // pred_region
          %s2304 = sand.u32 %s168, 1
          %s2305 = scalar_lea.sflag [#allocation12], %s2304
          %s2306 = sand.u32 %s168, 1
          %s2307 = smul.addr %s2306, 4
          %s2308 = scalar_lea.vmem [#allocation11], %s2307
          %2309 = dma.done %s2305, 64
        $region76: #{tpu_custom_call.1} parent=67 // pred_fallthru
          _
      $region68: #{tpu_custom_call.1} parent=5 // pred_fallthru
        _
    $region6: #{tpu_custom_call.1} parent=1 // loop_footer
      %s27 = sadd.s32 1, %s23
    $region7: #{tpu_custom_call.1} parent=1 // loop_footer_branch
      %22 = sbr.rel target = $region3
    $region8: #{tpu_custom_call.1} parent=1 // loop_exit
      _
    %2310 = vsyncpa [#allocation3], 1
    %s2311 = scalar_lea.sflag [#allocation3], 1
    %2312 = vsyncpa %s2311, 1
    %2313 = vsyncpa [#allocation6], 1
    %2314 = vsyncpa [#allocation9], 1
    %2315 = vsyncpa [#allocation4], 1
    %s2316 = scalar_lea.sflag [#allocation4], 1
    %2317 = vsyncpa %s2316, 1
    %2318 = vsyncpa [#allocation12], 1
    %s2319 = scalar_lea.sflag [#allocation12], 1
    %2320 = vsyncpa %s2319, 1

</llo_original>
